<compile_context>
chip_gen: v6e
topology: v6e:2x2x1
jax: 0.10.0
libtpu: 0.0.40
codegen_flags: <defaults>
</compile_context>

<pallas_src>
import jax
import jax.numpy as jnp
from jax.experimental import pallas as pl
from jax.experimental.pallas import tpu as pltpu


def _sigmoid(x):
    return 1.0 / (1.0 + jnp.exp(-x))


# ----------------------------------------------------------------------------
# Kernel 1: one fused decoder timestep (attention + LSTMCell + output layer),
# iterated over time by the pallas grid with VMEM-resident recurrent state.
# ----------------------------------------------------------------------------
def _decoder_step_kernel(emb_ref, enc_ref, mask_ref,
                         wq_ref, wc_ref, bc_ref,
                         wihe_ref, wihc_ref, whh_ref, bg_ref,
                         wout_ref, bout_ref,
                         logit_ref, attn_ref,
                         h_sc, c_sc):
    t = pl.program_id(0)

    # zero_state() for dec_h / dec_c on the first timestep
    @pl.when(t == 0)
    def _():
        h_sc[...] = jnp.zeros_like(h_sc)
        c_sc[...] = jnp.zeros_like(c_sc)

    h = h_sc[...]                  # (B, H)
    c_prev = c_sc[...]             # (B, H)
    emb = emb_ref[0]               # (B, E)   teacher-forced embedding for step t
    enc = enc_ref[...]             # (B, T, D_enc)
    mask = mask_ref[...]           # (B, T)   additive length mask (0 / -1e9)

    # ---- masked dot-product attention over encoder timesteps ----
    q = jnp.dot(h, wq_ref[...], preferred_element_type=jnp.float32)        # (B, D_enc)
    energy = jnp.sum(q[:, None, :] * enc, axis=-1) + mask                  # (B, T)
    m = jnp.max(energy, axis=-1, keepdims=True)
    p = jnp.exp(energy - m)
    attn = p / jnp.sum(p, axis=-1, keepdims=True)                          # (B, T)
    ctx_raw = jnp.sum(attn[:, :, None] * enc, axis=1)                      # (B, D_enc)
    ctx = jnp.dot(ctx_raw, wc_ref[...],
                  preferred_element_type=jnp.float32) + bc_ref[...]        # (B, A)

    # ---- LSTMCell on cat([emb, ctx]); the concat is folded into 2 matmuls ----
    gates = (jnp.dot(emb, wihe_ref[...], preferred_element_type=jnp.float32)
             + jnp.dot(ctx, wihc_ref[...], preferred_element_type=jnp.float32)
             + jnp.dot(h, whh_ref[...], preferred_element_type=jnp.float32)
             + bg_ref[...])                                                # (B, 4H)
    H = h.shape[-1]
    i_g = _sigmoid(gates[:, 0:H])
    f_g = _sigmoid(gates[:, H:2 * H])
    g_g = jnp.tanh(gates[:, 2 * H:3 * H])
    o_g = _sigmoid(gates[:, 3 * H:4 * H])
    c_new = f_g * c_prev + i_g * g_g
    h_new = o_g * jnp.tanh(c_new)
    # TODO(synk): F.dropout(training=True) not implemented; eval mode => identity.

    # ---- output projection ----
    logit = jnp.dot(h_new, wout_ref[...],
                    preferred_element_type=jnp.float32) + bout_ref[...]    # (B, V)

    logit_ref[0] = logit.astype(logit_ref.dtype)
    attn_ref[0] = attn.astype(attn_ref.dtype)
    h_sc[...] = h_new
    c_sc[...] = c_new


# ----------------------------------------------------------------------------
# Kernel 2: fused log_softmax over vocab + gather of gold-target log-probs.
# ----------------------------------------------------------------------------
def _logsoftmax_gather_kernel(logits_ref, tgt_ref, logp_ref, gold_ref):
    x = logits_ref[...].astype(jnp.float32)                    # (B, L, V)
    m = jnp.max(x, axis=-1, keepdims=True)
    s = x - m
    lse = jnp.log(jnp.sum(jnp.exp(s), axis=-1, keepdims=True))
    lp = s - lse                                               # (B, L, V)
    logp_ref[...] = lp.astype(logp_ref.dtype)

    tgt = tgt_ref[...]                                         # (B, L) int32
    vid = jax.lax.broadcasted_iota(jnp.int32, lp.shape, 2)     # (B, L, V)
    onehot = (vid == tgt[:, :, None]).astype(jnp.float32)
    gold_ref[...] = jnp.sum(lp * onehot, axis=-1).astype(gold_ref.dtype)


# ----------------------------------------------------------------------------
# Wrapper (the module's forward with dec_input given, tf_rate = 1.0)
# ----------------------------------------------------------------------------
def decoder_forward(params, enc_output, enc_len, dec_input):
    dec_in, dec_out = dec_input
    B, T_enc, D_enc = enc_output.shape
    L = dec_in.shape[1]
    E = params["embedding"].shape[1]
    H = params["W_hh"].shape[0]
    A = params["W_c"].shape[1]
    V = params["W_out"].shape[1]

    # teacher-forced input embeddings: (L, B, E) so the grid indexes time
    emb_seq = jnp.take(params["embedding"], dec_in, axis=0)        # (B, L, E)
    emb_seq = jnp.transpose(emb_seq, (1, 0, 2)).astype(jnp.float32)

    # additive length mask for the attention softmax
    t_iota = jnp.arange(T_enc, dtype=jnp.int32)[None, :]
    mask = jnp.where(t_iota < enc_len[:, None], 0.0, -1e9).astype(jnp.float32)

    full2 = lambda shape: pl.BlockSpec(shape, lambda t: (0, 0))
    full3 = lambda shape: pl.BlockSpec(shape, lambda t: (0, 0, 0))

    grid_spec = pltpu.PrefetchScalarGridSpec(
        num_scalar_prefetch=0,
        grid=(L,),
        in_specs=[
            pl.BlockSpec((1, B, E), lambda t: (t, 0, 0)),   # emb_seq   (per-step)
            full3((B, T_enc, D_enc)),                       # enc_output (resident)
            full2((B, T_enc)),                              # mask       (resident)
            full2((H, D_enc)),                              # W_q
            full2((D_enc, A)),                              # W_c
            full2((1, A)),                                  # b_c
            full2((E, 4 * H)),                              # W_ih (emb part)
            full2((A, 4 * H)),                              # W_ih (ctx part)
            full2((H, 4 * H)),                              # W_hh
            full2((1, 4 * H)),                              # b_ih + b_hh
            full2((H, V)),                                  # W_out
            full2((1, V)),                                  # b_out
        ],
        out_specs=[
            pl.BlockSpec((1, B, V), lambda t: (t, 0, 0)),        # logits (L,B,V)
            pl.BlockSpec((1, B, T_enc), lambda t: (t, 0, 0)),    # attns  (L,B,T)
        ],
        scratch_shapes=[
            pltpu.VMEM((B, H), jnp.float32),   # dec_h
            pltpu.VMEM((B, H), jnp.float32),   # dec_c
        ],
    )

    logits_lbv, attns_lbt = pl.pallas_call(
        _decoder_step_kernel,
        out_shape=(
            jax.ShapeDtypeStruct((L, B, V), jnp.float32),
            jax.ShapeDtypeStruct((L, B, T_enc), jnp.float32),
        ),
        grid_spec=grid_spec,
        compiler_params=pltpu.CompilerParams(
            # recurrence through VMEM scratch => time axis must run sequentially
            dimension_semantics=("arbitrary",),
        ),
    )(emb_seq, enc_output.astype(jnp.float32), mask,
      params["W_q"], params["W_c"], params["b_c"],
      params["W_ih_e"], params["W_ih_c"], params["W_hh"], params["b_gates"],
      params["W_out"], params["b_out"])

    logits = jnp.transpose(logits_lbv, (1, 0, 2))   # (B, L, V)
    attns = jnp.transpose(attns_lbt, (1, 0, 2))     # (B, L, T_enc)

    # log_softmax + gather at the gold targets (second fused kernel)
    log_probs, dec_output_log_probs = pl.pallas_call(
        _logsoftmax_gather_kernel,
        out_shape=(
            jax.ShapeDtypeStruct((B, L, V), jnp.float32),
            jax.ShapeDtypeStruct((B, L), jnp.float32),
        ),
        in_specs=[pl.BlockSpec(memory_space=pltpu.MemorySpace.VMEM),
                  pl.BlockSpec(memory_space=pltpu.MemorySpace.VMEM)],
        out_specs=(pl.BlockSpec(memory_space=pltpu.MemorySpace.VMEM),
                   pl.BlockSpec(memory_space=pltpu.MemorySpace.VMEM)),
    )(logits, dec_out.astype(jnp.int32))

    del log_probs  # only the gathered gold log-probs are returned (ls_weight = 0)

    prediction = jnp.argmax(logits, axis=-1).astype(jnp.int32)
    return logits, dec_output_log_probs, prediction, attns


# ----------------------------------------------------------------------------
# Parameter init (mirrors the module's layers; LSTMCell biases pre-summed)
# ----------------------------------------------------------------------------
def init_params(key, output_dim, embedding_dim, hidden_dim, enc_dim, att_odim, pad):
    ks = jax.random.split(key, 10)
    rn = lambda k, shape, s=0.1: s * jax.random.normal(k, shape, dtype=jnp.float32)
    emb = rn(ks[0], (output_dim, embedding_dim))
    emb = emb.at[pad].set(0.0)                 # padding_idx row is zero
    return {
        "embedding": emb,
        "W_q": rn(ks[1], (hidden_dim, enc_dim)),
        "W_c": rn(ks[2], (enc_dim, att_odim)),
        "b_c": rn(ks[3], (1, att_odim)),
        "W_ih_e": rn(ks[4], (embedding_dim, 4 * hidden_dim)),
        "W_ih_c": rn(ks[5], (att_odim, 4 * hidden_dim)),
        "W_hh": rn(ks[6], (hidden_dim, 4 * hidden_dim)),
        "b_gates": rn(ks[7], (1, 4 * hidden_dim)),   # b_ih + b_hh
        "W_out": rn(ks[8], (hidden_dim, output_dim)),
        "b_out": rn(ks[9], (1, output_dim)),
    }


# ----------------------------------------------------------------------------
# Pure-JAX reference (same math) for a correctness check
# ----------------------------------------------------------------------------
def _reference_forward(params, enc_output, enc_len, dec_in, dec_out):
    B, T_enc, _ = enc_output.shape
    H = params["W_hh"].shape[0]
    t_iota = jnp.arange(T_enc, dtype=jnp.int32)[None, :]
    mask = jnp.where(t_iota < enc_len[:, None], 0.0, -1e9).astype(jnp.float32)
    emb_seq = jnp.transpose(jnp.take(params["embedding"], dec_in, axis=0), (1, 0, 2))

    def step(carry, emb):
        h, c = carry
        q = h @ params["W_q"]
        e = jnp.einsum("bd,btd->bt", q, enc_output) + mask
        attn = jax.nn.softmax(e, axis=-1)
        ctx = jnp.einsum("bt,btd->bd", attn, enc_output) @ params["W_c"] + params["b_c"]
        gates = (emb @ params["W_ih_e"] + ctx @ params["W_ih_c"]
                 + h @ params["W_hh"] + params["b_gates"])
        i_g = _sigmoid(gates[:, 0:H])
        f_g = _sigmoid(gates[:, H:2 * H])
        g_g = jnp.tanh(gates[:, 2 * H:3 * H])
        o_g = _sigmoid(gates[:, 3 * H:4 * H])
        c_new = f_g * c + i_g * g_g
        h_new = o_g * jnp.tanh(c_new)
        logit = h_new @ params["W_out"] + params["b_out"]
        return (h_new, c_new), (logit, attn)

    init = (jnp.zeros((B, H), jnp.float32), jnp.zeros((B, H), jnp.float32))
    _, (logits_lbv, attns_lbt) = jax.lax.scan(step, init, emb_seq)
    logits = jnp.transpose(logits_lbv, (1, 0, 2))
    attns = jnp.transpose(attns_lbt, (1, 0, 2))
    log_probs = jax.nn.log_softmax(logits, axis=-1)
    gold = jnp.take_along_axis(log_probs, dec_out[..., None], axis=-1)[..., 0]
    pred = jnp.argmax(logits, axis=-1).astype(jnp.int32)
    return logits, gold, pred, attns


if __name__ == "__main__":
    key = jax.random.PRNGKey(0)

    # Small shapes consistent with the module.
    B, T_enc, D_enc = 2, 8, 32          # batch, encoder timesteps, encoder dim
    V, E, H, A = 16, 8, 32, 16          # vocab, embedding, hidden, att_odim
    L = 5                               # decoder timesteps (teacher forcing)
    bos, eos, pad = 1, 2, 0

    k_par, k_enc, k_in, k_out = jax.random.split(key, 4)
    params = init_params(k_par, V, E, H, D_enc, A, pad)

    enc_output = jax.random.normal(k_enc, (B, T_enc, D_enc), dtype=jnp.float32)
    enc_len = jnp.array([T_enc, T_enc - 2], dtype=jnp.int32)
    dec_in = jnp.concatenate(
        [jnp.full((B, 1), bos, dtype=jnp.int32),
         jax.random.randint(k_in, (B, L - 1), 3, V, dtype=jnp.int32)], axis=1)
    dec_out = jax.random.randint(k_out, (B, L), 3, V, dtype=jnp.int32)

    logits, gold_lp, pred, attns = decoder_forward(
        params, enc_output, enc_len, (dec_in, dec_out))
    logits, gold_lp, pred, attns = jax.block_until_ready(
        (logits, gold_lp, pred, attns))

    # shape / invariant / reference checks
    assert logits.shape == (B, L, V) and attns.shape == (B, L, T_enc)
    assert gold_lp.shape == (B, L) and pred.shape == (B, L)
    assert bool(jnp.all(jnp.isfinite(logits)))
    assert bool(jnp.allclose(attns.sum(-1), 1.0, atol=1e-3))

    r_logits, r_gold, r_pred, r_attns = _reference_forward(
        params, enc_output, enc_len, dec_in, dec_out)
    assert bool(jnp.allclose(logits, r_logits, atol=2e-2, rtol=2e-2))
    assert bool(jnp.allclose(gold_lp, r_gold, atol=2e-2, rtol=2e-2))
    assert bool(jnp.allclose(attns, r_attns, atol=2e-2, rtol=2e-2))

    print("KERNEL_OK")
</pallas_src>

<mosaic_0001>
module attributes {stable_mosaic.version = 11 : i64} {
  func.func @_decoder_step_kernel(%arg0: i32, %arg1: memref<1x2x8xf32, #tpu.memory_space<vmem>>, %arg2: memref<2x8x32xf32, #tpu.memory_space<vmem>>, %arg3: memref<2x8xf32, #tpu.memory_space<vmem>>, %arg4: memref<32x32xf32, #tpu.memory_space<vmem>>, %arg5: memref<32x16xf32, #tpu.memory_space<vmem>>, %arg6: memref<1x16xf32, #tpu.memory_space<vmem>>, %arg7: memref<8x128xf32, #tpu.memory_space<vmem>>, %arg8: memref<16x128xf32, #tpu.memory_space<vmem>>, %arg9: memref<32x128xf32, #tpu.memory_space<vmem>>, %arg10: memref<1x128xf32, #tpu.memory_space<vmem>>, %arg11: memref<32x16xf32, #tpu.memory_space<vmem>>, %arg12: memref<1x16xf32, #tpu.memory_space<vmem>>, %arg13: memref<1x2x16xf32, #tpu.memory_space<vmem>>, %arg14: memref<1x2x8xf32, #tpu.memory_space<vmem>>, %arg15: memref<2x32xf32, #tpu.memory_space<vmem>>, %arg16: memref<2x32xf32, #tpu.memory_space<vmem>>) attributes {dimension_semantics = [#tpu.dimension_semantics<arbitrary>], iteration_bounds = array<i64: 5>, scalar_prefetch = 0 : i64, scratch_operands = 2 : i64, tpu.core_type = #tpu.core_type<tc>, window_params = [{transform_indices = @transform_0, window_bounds = array<i64: 1, 2, 8>}, {pipeline_mode = #tpu.pipeline_mode<synchronous>, transform_indices = @transform_1, window_bounds = array<i64: 2, 8, 32>}, {pipeline_mode = #tpu.pipeline_mode<synchronous>, transform_indices = @transform_2, window_bounds = array<i64: 2, 8>}, {pipeline_mode = #tpu.pipeline_mode<synchronous>, transform_indices = @transform_3, window_bounds = array<i64: 32, 32>}, {pipeline_mode = #tpu.pipeline_mode<synchronous>, transform_indices = @transform_4, window_bounds = array<i64: 32, 16>}, {pipeline_mode = #tpu.pipeline_mode<synchronous>, transform_indices = @transform_5, window_bounds = array<i64: 1, 16>}, {pipeline_mode = #tpu.pipeline_mode<synchronous>, transform_indices = @transform_6, window_bounds = array<i64: 8, 128>}, {pipeline_mode = #tpu.pipeline_mode<synchronous>, transform_indices = @transform_7, window_bounds = array<i64: 16, 128>}, {pipeline_mode = #tpu.pipeline_mode<synchronous>, transform_indices = @transform_8, window_bounds = array<i64: 32, 128>}, {pipeline_mode = #tpu.pipeline_mode<synchronous>, transform_indices = @transform_9, window_bounds = array<i64: 1, 128>}, {pipeline_mode = #tpu.pipeline_mode<synchronous>, transform_indices = @transform_10, window_bounds = array<i64: 32, 16>}, {pipeline_mode = #tpu.pipeline_mode<synchronous>, transform_indices = @transform_11, window_bounds = array<i64: 1, 16>}, {transform_indices = @transform_12, window_bounds = array<i64: 1, 2, 16>}, {transform_indices = @transform_13, window_bounds = array<i64: 1, 2, 8>}]} {
    %c0_i32 = arith.constant 0 : i32
    %0 = arith.cmpi eq, %arg0, %c0_i32 : i32
    %1 = arith.extui %0 : i1 to i32
    %c0_i32_0 = arith.constant 0 : i32
    %2 = arith.cmpi ne, %1, %c0_i32_0 : i32
    scf.if %2 {
      %cst_58 = arith.constant 0.000000e+00 : f32
      %89 = vector.broadcast %cst_58 : f32 to vector<2x32xf32>
      %c0_59 = arith.constant 0 : index
      %c0_60 = arith.constant 0 : index
      %90 = vector.load %arg15[%c0_59, %c0_60] : memref<2x32xf32, #tpu.memory_space<vmem>>, vector<2x32xf32>
      tpu.vector_store %arg15[%c0_59, %c0_60], %89 {strides = array<i32>} : memref<2x32xf32, #tpu.memory_space<vmem>>, vector<2x32xf32>,
      %cst_61 = arith.constant 0.000000e+00 : f32
      %91 = vector.broadcast %cst_61 : f32 to vector<2x32xf32>
      %c0_62 = arith.constant 0 : index
      %c0_63 = arith.constant 0 : index
      %92 = vector.load %arg16[%c0_62, %c0_63] : memref<2x32xf32, #tpu.memory_space<vmem>>, vector<2x32xf32>
      tpu.vector_store %arg16[%c0_62, %c0_63], %91 {strides = array<i32>} : memref<2x32xf32, #tpu.memory_space<vmem>>, vector<2x32xf32>,
    } else {
    }
    %c0 = arith.constant 0 : index
    %c0_1 = arith.constant 0 : index
    %3 = vector.load %arg15[%c0, %c0_1] : memref<2x32xf32, #tpu.memory_space<vmem>>, vector<2x32xf32>
    %c0_2 = arith.constant 0 : index
    %c0_3 = arith.constant 0 : index
    %4 = vector.load %arg16[%c0_2, %c0_3] : memref<2x32xf32, #tpu.memory_space<vmem>>, vector<2x32xf32>
    %c0_4 = arith.constant 0 : index
    %c0_5 = arith.constant 0 : index
    %c0_6 = arith.constant 0 : index
    %5 = vector.load %arg1[%c0_4, %c0_5, %c0_6] : memref<1x2x8xf32, #tpu.memory_space<vmem>>, vector<1x2x8xf32>
    %6 = vector.shape_cast %5 : vector<1x2x8xf32> to vector<2x8xf32>
    %c0_7 = arith.constant 0 : index
    %c0_8 = arith.constant 0 : index
    %c0_9 = arith.constant 0 : index
    %7 = vector.load %arg2[%c0_7, %c0_8, %c0_9] : memref<2x8x32xf32, #tpu.memory_space<vmem>>, vector<2x8x32xf32>
    %c0_10 = arith.constant 0 : index
    %c0_11 = arith.constant 0 : index
    %8 = vector.load %arg3[%c0_10, %c0_11] : memref<2x8xf32, #tpu.memory_space<vmem>>, vector<2x8xf32>
    %c0_12 = arith.constant 0 : index
    %c0_13 = arith.constant 0 : index
    %9 = vector.load %arg4[%c0_12, %c0_13] : memref<32x32xf32, #tpu.memory_space<vmem>>, vector<32x32xf32>
    %cst = arith.constant dense<0.000000e+00> : vector<2x32xf32>
    %10 = tpu.matmul %3, %9, %cst {dimension_numbers = #tpu.dot_dimension_numbers<[1], [0], [0], [1], [0, 0, 1, 1], [], []>} : vector<2x32xf32>, vector<32x32xf32>, vector<2x32xf32> -> vector<2x32xf32>
    %11 = vector.shape_cast %10 : vector<2x32xf32> to vector<2x1x32xf32>
    %12 = vector.broadcast %11 : vector<2x1x32xf32> to vector<2x8x32xf32>
    %13 = arith.mulf %12, %7 : vector<2x8x32xf32>
    %cst_14 = arith.constant dense<0.000000e+00> : vector<2x8xf32>
    %14 = vector.multi_reduction <add>, %13, %cst_14 [2] : vector<2x8x32xf32> to vector<2x8xf32>
    %15 = arith.addf %14, %8 : vector<2x8xf32>
    %cst_15 = arith.constant dense<0xFF800000> : vector<2xf32>
    %16 = vector.multi_reduction <maximumf>, %15, %cst_15 [1] : vector<2x8xf32> to vector<2xf32>
    %17 = vector.shape_cast %16 : vector<2xf32> to vector<2x1xf32>
    %18 = vector.broadcast %17 : vector<2x1xf32> to vector<2x8xf32>
    %19 = arith.subf %15, %18 : vector<2x8xf32>
    %20 = math.exp %19 : vector<2x8xf32>
    %cst_16 = arith.constant dense<0.000000e+00> : vector<2xf32>
    %21 = vector.multi_reduction <add>, %20, %cst_16 [1] : vector<2x8xf32> to vector<2xf32>
    %22 = vector.shape_cast %21 : vector<2xf32> to vector<2x1xf32>
    %23 = vector.broadcast %22 : vector<2x1xf32> to vector<2x8xf32>
    %24 = arith.divf %20, %23 : vector<2x8xf32>
    %25 = vector.shape_cast %24 : vector<2x8xf32> to vector<2x8x1xf32>
    %26 = vector.broadcast %25 : vector<2x8x1xf32> to vector<2x8x32xf32>
    %27 = arith.mulf %26, %7 : vector<2x8x32xf32>
    %cst_17 = arith.constant dense<0.000000e+00> : vector<2x32xf32>
    %28 = vector.multi_reduction <add>, %27, %cst_17 [1] : vector<2x8x32xf32> to vector<2x32xf32>
    %c0_18 = arith.constant 0 : index
    %c0_19 = arith.constant 0 : index
    %29 = vector.load %arg5[%c0_18, %c0_19] : memref<32x16xf32, #tpu.memory_space<vmem>>, vector<32x16xf32>
    %cst_20 = arith.constant dense<0.000000e+00> : vector<2x16xf32>
    %30 = tpu.matmul %28, %29, %cst_20 {dimension_numbers = #tpu.dot_dimension_numbers<[1], [0], [0], [1], [0, 0, 1, 1], [], []>} : vector<2x32xf32>, vector<32x16xf32>, vector<2x16xf32> -> vector<2x16xf32>
    %c0_21 = arith.constant 0 : index
    %c0_22 = arith.constant 0 : index
    %31 = vector.load %arg6[%c0_21, %c0_22] : memref<1x16xf32, #tpu.memory_space<vmem>>, vector<1x16xf32>
    %32 = vector.broadcast %31 : vector<1x16xf32> to vector<2x16xf32>
    %33 = arith.addf %30, %32 : vector<2x16xf32>
    %c0_23 = arith.constant 0 : index
    %c0_24 = arith.constant 0 : index
    %34 = vector.load %arg7[%c0_23, %c0_24] : memref<8x128xf32, #tpu.memory_space<vmem>>, vector<8x128xf32>
    %cst_25 = arith.constant dense<0.000000e+00> : vector<2x128xf32>
    %35 = tpu.matmul %6, %34, %cst_25 {dimension_numbers = #tpu.dot_dimension_numbers<[1], [0], [0], [1], [0, 0, 1, 1], [], []>} : vector<2x8xf32>, vector<8x128xf32>, vector<2x128xf32> -> vector<2x128xf32>
    %c0_26 = arith.constant 0 : index
    %c0_27 = arith.constant 0 : index
    %36 = vector.load %arg8[%c0_26, %c0_27] : memref<16x128xf32, #tpu.memory_space<vmem>>, vector<16x128xf32>
    %cst_28 = arith.constant dense<0.000000e+00> : vector<2x128xf32>
    %37 = tpu.matmul %33, %36, %cst_28 {dimension_numbers = #tpu.dot_dimension_numbers<[1], [0], [0], [1], [0, 0, 1, 1], [], []>} : vector<2x16xf32>, vector<16x128xf32>, vector<2x128xf32> -> vector<2x128xf32>
    %38 = arith.addf %35, %37 : vector<2x128xf32>
    %c0_29 = arith.constant 0 : index
    %c0_30 = arith.constant 0 : index
    %39 = vector.load %arg9[%c0_29, %c0_30] : memref<32x128xf32, #tpu.memory_space<vmem>>, vector<32x128xf32>
    %cst_31 = arith.constant dense<0.000000e+00> : vector<2x128xf32>
    %40 = tpu.matmul %3, %39, %cst_31 {dimension_numbers = #tpu.dot_dimension_numbers<[1], [0], [0], [1], [0, 0, 1, 1], [], []>} : vector<2x32xf32>, vector<32x128xf32>, vector<2x128xf32> -> vector<2x128xf32>
    %41 = arith.addf %38, %40 : vector<2x128xf32>
    %c0_32 = arith.constant 0 : index
    %c0_33 = arith.constant 0 : index
    %42 = vector.load %arg10[%c0_32, %c0_33] : memref<1x128xf32, #tpu.memory_space<vmem>>, vector<1x128xf32>
    %43 = vector.broadcast %42 : vector<1x128xf32> to vector<2x128xf32>
    %44 = arith.addf %41, %43 : vector<2x128xf32>
    %45 = vector.extract_strided_slice %44 {offsets = [0, 0], sizes = [2, 32], strides = [1, 1]} : vector<2x128xf32> to vector<2x32xf32>
    %cst_34 = arith.constant 0.000000e+00 : f32
    %46 = vector.broadcast %cst_34 : f32 to vector<2x32xf32>
    %47 = arith.subf %46, %45 : vector<2x32xf32>
    %48 = math.exp %47 : vector<2x32xf32>
    %cst_35 = arith.constant 1.000000e+00 : f32
    %49 = vector.broadcast %cst_35 : f32 to vector<2x32xf32>
    %50 = arith.addf %49, %48 : vector<2x32xf32>
    %cst_36 = arith.constant 1.000000e+00 : f32
    %51 = vector.broadcast %cst_36 : f32 to vector<2x32xf32>
    %52 = arith.divf %51, %50 : vector<2x32xf32>
    %53 = vector.extract_strided_slice %44 {offsets = [0, 32], sizes = [2, 32], strides = [1, 1]} : vector<2x128xf32> to vector<2x32xf32>
    %cst_37 = arith.constant 0.000000e+00 : f32
    %54 = vector.broadcast %cst_37 : f32 to vector<2x32xf32>
    %55 = arith.subf %54, %53 : vector<2x32xf32>
    %56 = math.exp %55 : vector<2x32xf32>
    %cst_38 = arith.constant 1.000000e+00 : f32
    %57 = vector.broadcast %cst_38 : f32 to vector<2x32xf32>
    %58 = arith.addf %57, %56 : vector<2x32xf32>
    %cst_39 = arith.constant 1.000000e+00 : f32
    %59 = vector.broadcast %cst_39 : f32 to vector<2x32xf32>
    %60 = arith.divf %59, %58 : vector<2x32xf32>
    %61 = vector.extract_strided_slice %44 {offsets = [0, 64], sizes = [2, 32], strides = [1, 1]} : vector<2x128xf32> to vector<2x32xf32>
    %62 = math.tanh %61 : vector<2x32xf32>
    %63 = vector.extract_strided_slice %44 {offsets = [0, 96], sizes = [2, 32], strides = [1, 1]} : vector<2x128xf32> to vector<2x32xf32>
    %cst_40 = arith.constant 0.000000e+00 : f32
    %64 = vector.broadcast %cst_40 : f32 to vector<2x32xf32>
    %65 = arith.subf %64, %63 : vector<2x32xf32>
    %66 = math.exp %65 : vector<2x32xf32>
    %cst_41 = arith.constant 1.000000e+00 : f32
    %67 = vector.broadcast %cst_41 : f32 to vector<2x32xf32>
    %68 = arith.addf %67, %66 : vector<2x32xf32>
    %cst_42 = arith.constant 1.000000e+00 : f32
    %69 = vector.broadcast %cst_42 : f32 to vector<2x32xf32>
    %70 = arith.divf %69, %68 : vector<2x32xf32>
    %71 = arith.mulf %60, %4 : vector<2x32xf32>
    %72 = arith.mulf %52, %62 : vector<2x32xf32>
    %73 = arith.addf %71, %72 : vector<2x32xf32>
    %74 = math.tanh %73 : vector<2x32xf32>
    %75 = arith.mulf %70, %74 : vector<2x32xf32>
    %c0_43 = arith.constant 0 : index
    %c0_44 = arith.constant 0 : index
    %76 = vector.load %arg11[%c0_43, %c0_44] : memref<32x16xf32, #tpu.memory_space<vmem>>, vector<32x16xf32>
    %cst_45 = arith.constant dense<0.000000e+00> : vector<2x16xf32>
    %77 = tpu.matmul %75, %76, %cst_45 {dimension_numbers = #tpu.dot_dimension_numbers<[1], [0], [0], [1], [0, 0, 1, 1], [], []>} : vector<2x32xf32>, vector<32x16xf32>, vector<2x16xf32> -> vector<2x16xf32>
    %c0_46 = arith.constant 0 : index
    %c0_47 = arith.constant 0 : index
    %78 = vector.load %arg12[%c0_46, %c0_47] : memref<1x16xf32, #tpu.memory_space<vmem>>, vector<1x16xf32>
    %79 = vector.broadcast %78 : vector<1x16xf32> to vector<2x16xf32>
    %80 = arith.addf %77, %79 : vector<2x16xf32>
    %c0_48 = arith.constant 0 : index
    %c0_49 = arith.constant 0 : index
    %c0_50 = arith.constant 0 : index
    %81 = vector.load %arg13[%c0_48, %c0_49, %c0_50] : memref<1x2x16xf32, #tpu.memory_space<vmem>>, vector<1x2x16xf32>
    %82 = vector.shape_cast %81 : vector<1x2x16xf32> to vector<2x16xf32>
    %83 = vector.shape_cast %80 : vector<2x16xf32> to vector<1x2x16xf32>
    tpu.vector_store %arg13[%c0_48, %c0_49, %c0_50], %83 {strides = array<i32>} : memref<1x2x16xf32, #tpu.memory_space<vmem>>, vector<1x2x16xf32>,
    %c0_51 = arith.constant 0 : index
    %c0_52 = arith.constant 0 : index
    %c0_53 = arith.constant 0 : index
    %84 = vector.load %arg14[%c0_51, %c0_52, %c0_53] : memref<1x2x8xf32, #tpu.memory_space<vmem>>, vector<1x2x8xf32>
    %85 = vector.shape_cast %84 : vector<1x2x8xf32> to vector<2x8xf32>
    %86 = vector.shape_cast %24 : vector<2x8xf32> to vector<1x2x8xf32>
    tpu.vector_store %arg14[%c0_51, %c0_52, %c0_53], %86 {strides = array<i32>} : memref<1x2x8xf32, #tpu.memory_space<vmem>>, vector<1x2x8xf32>,
    %c0_54 = arith.constant 0 : index
    %c0_55 = arith.constant 0 : index
    %87 = vector.load %arg15[%c0_54, %c0_55] : memref<2x32xf32, #tpu.memory_space<vmem>>, vector<2x32xf32>
    tpu.vector_store %arg15[%c0_54, %c0_55], %75 {strides = array<i32>} : memref<2x32xf32, #tpu.memory_space<vmem>>, vector<2x32xf32>,
    %c0_56 = arith.constant 0 : index
    %c0_57 = arith.constant 0 : index
    %88 = vector.load %arg16[%c0_56, %c0_57] : memref<2x32xf32, #tpu.memory_space<vmem>>, vector<2x32xf32>
    tpu.vector_store %arg16[%c0_56, %c0_57], %73 {strides = array<i32>} : memref<2x32xf32, #tpu.memory_space<vmem>>, vector<2x32xf32>,
    return
  }
  func.func @transform_0(%arg0: i32) -> (i32, i32, i32) {
    %c0_i32 = arith.constant 0 : i32
    %c0_i32_0 = arith.constant 0 : i32
    %c0_i32_1 = arith.constant 0 : i32
    return %arg0, %c0_i32, %c0_i32_0 : i32, i32, i32
  }
  func.func @transform_1(%arg0: i32) -> (i32, i32, i32) {
    %c0_i32 = arith.constant 0 : i32
    %c0_i32_0 = arith.constant 0 : i32
    %c0_i32_1 = arith.constant 0 : i32
    %c0_i32_2 = arith.constant 0 : i32
    return %c0_i32, %c0_i32_0, %c0_i32_1 : i32, i32, i32
  }
  func.func @transform_2(%arg0: i32) -> (i32, i32) {
    %c0_i32 = arith.constant 0 : i32
    %c0_i32_0 = arith.constant 0 : i32
    %c0_i32_1 = arith.constant 0 : i32
    return %c0_i32, %c0_i32_0 : i32, i32
  }
  func.func @transform_3(%arg0: i32) -> (i32, i32) {
    %c0_i32 = arith.constant 0 : i32
    %c0_i32_0 = arith.constant 0 : i32
    %c0_i32_1 = arith.constant 0 : i32
    return %c0_i32, %c0_i32_0 : i32, i32
  }
  func.func @transform_4(%arg0: i32) -> (i32, i32) {
    %c0_i32 = arith.constant 0 : i32
    %c0_i32_0 = arith.constant 0 : i32
    %c0_i32_1 = arith.constant 0 : i32
    return %c0_i32, %c0_i32_0 : i32, i32
  }
  func.func @transform_5(%arg0: i32) -> (i32, i32) {
    %c0_i32 = arith.constant 0 : i32
    %c0_i32_0 = arith.constant 0 : i32
    %c0_i32_1 = arith.constant 0 : i32
    return %c0_i32, %c0_i32_0 : i32, i32
  }
  func.func @transform_6(%arg0: i32) -> (i32, i32) {
    %c0_i32 = arith.constant 0 : i32
    %c0_i32_0 = arith.constant 0 : i32
    %c0_i32_1 = arith.constant 0 : i32
    return %c0_i32, %c0_i32_0 : i32, i32
  }
  func.func @transform_7(%arg0: i32) -> (i32, i32) {
    %c0_i32 = arith.constant 0 : i32
    %c0_i32_0 = arith.constant 0 : i32
    %c0_i32_1 = arith.constant 0 : i32
    return %c0_i32, %c0_i32_0 : i32, i32
  }
  func.func @transform_8(%arg0: i32) -> (i32, i32) {
    %c0_i32 = arith.constant 0 : i32
    %c0_i32_0 = arith.constant 0 : i32
    %c0_i32_1 = arith.constant 0 : i32
    return %c0_i32, %c0_i32_0 : i32, i32
  }
  func.func @transform_9(%arg0: i32) -> (i32, i32) {
    %c0_i32 = arith.constant 0 : i32
    %c0_i32_0 = arith.constant 0 : i32
    %c0_i32_1 = arith.constant 0 : i32
    return %c0_i32, %c0_i32_0 : i32, i32
  }
  func.func @transform_10(%arg0: i32) -> (i32, i32) {
    %c0_i32 = arith.constant 0 : i32
    %c0_i32_0 = arith.constant 0 : i32
    %c0_i32_1 = arith.constant 0 : i32
    return %c0_i32, %c0_i32_0 : i32, i32
  }
  func.func @transform_11(%arg0: i32) -> (i32, i32) {
    %c0_i32 = arith.constant 0 : i32
    %c0_i32_0 = arith.constant 0 : i32
    %c0_i32_1 = arith.constant 0 : i32
    return %c0_i32, %c0_i32_0 : i32, i32
  }
  func.func @transform_12(%arg0: i32) -> (i32, i32, i32) {
    %c0_i32 = arith.constant 0 : i32
    %c0_i32_0 = arith.constant 0 : i32
    %c0_i32_1 = arith.constant 0 : i32
    return %arg0, %c0_i32, %c0_i32_0 : i32, i32, i32
  }
  func.func @transform_13(%arg0: i32) -> (i32, i32, i32) {
    %c0_i32 = arith.constant 0 : i32
    %c0_i32_0 = arith.constant 0 : i32
    %c0_i32_1 = arith.constant 0 : i32
    return %arg0, %c0_i32, %c0_i32_0 : i32, i32, i32
  }
}

</mosaic_0001>

<llo_original>
// kernel: tpu_custom_call.1
$region0: #{tpu_custom_call.1}
  #allocation0 [shape = 'u32[]', space=smem, size = 0x4, offset = 0x4, fixed_abs, tag = 'smem constant byte address 0x4 - core index']
  #allocation1 [shape = 'u32[144,128]{1,0:T(1,128)}', space=vmem, size = 0x12000, scoped, tag = 'internal scratch']
  #allocation2 [shape = 'f32[2,32]{1,0:T(2,128)}', space=vmem, size = 0x400, scoped, tag = 'scratch operand']
  #allocation3 [shape = 'f32[2,32]{1,0:T(2,128)}', space=vmem, size = 0x400, scoped, tag = 'scratch operand']
  %s0 = inlined_call_operand.hbm [shape: f32[5,2,8], index: 0, kind: input, shape index: {}]
  %s1 = inlined_call_operand.vmem [shape: f32[2,8,32], index: 1, kind: input, shape index: {}]
  %s2 = inlined_call_operand.hbm [shape: f32[2,8], index: 2, kind: input, shape index: {}]
  %s3 = inlined_call_operand.vmem [shape: f32[32,32], index: 3, kind: input, shape index: {}]
  %s4 = inlined_call_operand.vmem [shape: f32[32,16], index: 4, kind: input, shape index: {}]
  %s5 = inlined_call_operand.vmem [shape: f32[1,16], index: 5, kind: input, shape index: {}]
  %s6 = inlined_call_operand.vmem [shape: f32[8,128], index: 6, kind: input, shape index: {}]
  %s7 = inlined_call_operand.hbm [shape: f32[16,128], index: 7, kind: input, shape index: {}]
  %s8 = inlined_call_operand.vmem [shape: f32[32,128], index: 8, kind: input, shape index: {}]
  %s9 = inlined_call_operand.vmem [shape: f32[1,128], index: 9, kind: input, shape index: {}]
  %s10 = inlined_call_operand.vmem [shape: f32[32,16], index: 10, kind: input, shape index: {}]
  %s11 = inlined_call_operand.vmem [shape: f32[1,16], index: 11, kind: input, shape index: {}]
  %s12 = inlined_call_operand.hbm [shape: f32[5,2,16], index: 12, kind: output, shape index: {0}]
  %s13 = inlined_call_operand.hbm [shape: f32[5,2,8], index: 13, kind: output, shape index: {1}]
  %14 = xla_tuple %s12, %s13
  %s15 = sld [smem:[#allocation0]]
  $region105: #{tpu_custom_call.1} parent=0
    _
  %s17 = ssub.s32 1, %s15
  %s18 = scalar_select 0, %s17, %s15
  $region1: #{tpu_custom_call.1} parent=0
    #allocation4 [shape = 'u8[2048]{0}', space=vmem, size = 0x800, scoped, tag = 'input window, operand 0']
    #allocation5 [shape = 's32[2]{0}', space=sflag, size = 0x8, scoped, tag = 'scoped memory for tpu_custom_call.1']
    #allocation6 [shape = 's32[2]{0}', space=sflag, size = 0x8, scoped, tag = 'scoped memory for tpu_custom_call.1']
    #allocation7 [shape = 'u8[1024]{0}', space=vmem, size = 0x400, scoped, tag = 'input window, operand 2, single buffered']
    #allocation8 [shape = 's32[1]{0}', space=sflag, size = 0x4, scoped, tag = 'scoped memory for tpu_custom_call.1']
    #allocation9 [shape = 'u8[8192]{0}', space=vmem, size = 0x2000, scoped, tag = 'input window, operand 7, single buffered']
    #allocation10 [shape = 'u8[2048]{0}', space=vmem, size = 0x800, scoped, tag = 'output window, operand 0']
    #allocation11 [shape = 'u8[2048]{0}', space=vmem, size = 0x800, scoped, tag = 'output window, operand 1']
    #allocation12 [shape = 's32[2]{0}', space=sflag, size = 0x8, scoped, tag = 'scoped memory for tpu_custom_call.1']
    %19 = vsyncpa [#allocation5], 0
    %s20 = scalar_lea.sflag [#allocation5], 1
    %21 = vsyncpa %s20, 0
    %22 = vsyncpa [#allocation8], 0
    %23 = vsyncpa [#allocation6], 0
    %s24 = scalar_lea.sflag [#allocation6], 1
    %25 = vsyncpa %s24, 0
    %26 = vsyncpa [#allocation12], 0
    %s27 = scalar_lea.sflag [#allocation12], 1
    %28 = vsyncpa %s27, 0
    loop: start=0, step=1, limit=7
    $region2: #{tpu_custom_call.1} parent=1 // loop_pre_header
      _
    $region3: #{tpu_custom_call.1} parent=1 // loop_header
      %s30 = sphi 0, %s34
      %p31 = scmp.ge.s32.totalorder %s30, 7
      %s40 = sphi 0, %s42
      %s43 = sphi 0, %s40
      %s44 = sphi 0, %s43
      %s60 = sphi 0, %s44
      %s64 = sphi 0, %s64
      %s66 = sphi 0, %s64
      %s67 = sphi 0, %s66
      %s81 = sphi 0, %s67
      %s85 = sphi 0, %s85
      %s87 = sphi 0, %s85
      %s88 = sphi 0, %s87
      %s102 = sphi 0, %s88
      %s106 = sphi 0, %s106
      %s108 = sphi 0, %s106
      %s109 = sphi 0, %s108
      %s123 = sphi 0, %s109
      %s127 = sphi 0, %s127
      %s129 = sphi 0, %s127
      %s130 = sphi 0, %s129
      %s144 = sphi 0, %s130
      %s148 = sphi 0, %s148
      %s150 = sphi 0, %s148
      %s151 = sphi 0, %s150
      %s165 = sphi 0, %s151
      %s169 = sphi 0, %s169
      %s171 = sphi 0, %s169
      %s172 = sphi 0, %s171
      %s186 = sphi 0, %s172
      %s190 = sphi 0, %s190
      %s192 = sphi 0, %s190
      %s193 = sphi 0, %s192
      %s207 = sphi 0, %s193
      %s211 = sphi 0, %s211
      %s213 = sphi 0, %s211
      %s214 = sphi 0, %s213
      %s228 = sphi 0, %s214
      %s232 = sphi 0, %s232
      %s234 = sphi 0, %s232
      %s235 = sphi 0, %s234
      %s249 = sphi 0, %s235
      %s253 = sphi 0, %s253
      %s255 = sphi 0, %s253
      %s256 = sphi 0, %s255
      %s270 = sphi 0, %s256
      %s274 = sphi 0, %s274
      %s276 = sphi 0, %s274
      %s277 = sphi 0, %s276
      %s291 = sphi 0, %s277
      %s297 = sphi 0, %s299
      %s300 = sphi 0, %s297
      %s301 = sphi 0, %s300
      %s317 = sphi 0, %s301
      %s323 = sphi 0, %s325
      %s326 = sphi 0, %s323
      %s327 = sphi 0, %s326
      %s343 = sphi 0, %s327
    $region4: #{tpu_custom_call.1} parent=1 // loop_header_branch
      %33 = sbr.rel (%p31) target = $region8
    $region5: #{tpu_custom_call.1} parent=1 // loop_body
      %s35 = ssub.s32 %s30, 1
      %s36 = ssub.s32 %s30, 2
      %s37 = sadd.s32 %s30, 1
      %s38 = ssub.s32 %s30, %s37
      %p39 = scmp.eq.s32.totalorder %s38, 0
      %s41 = sadd.s32 %s40, 1
      %s42 = scalar_select %p39, %s40, %s41
      %p45 = pneg %p39
      %p46 = scmp.eq.s32.totalorder %s30, 4
      %p47 = por %p45, %p46
      %p48 = scmp.ne.s32.totalorder %s40, %s43
      %p49 = scmp.eq.s32.totalorder %s30, 0
      %p50 = por %p48, %p49
      %p51 = scmp.ne.s32.totalorder %s40, %s43
      %p52 = scmp.eq.s32.totalorder %s35, 4
      %p53 = por %p51, %p52
      %p54 = scmp.ne.s32.totalorder %s43, %s44
      %p55 = scmp.eq.s32.totalorder %s35, 0
      %p56 = por %p54, %p55
      %p57 = scmp.ne.s32.totalorder %s43, %s44
      %p58 = scmp.eq.s32.totalorder %s36, 4
      %p59 = por %p57, %p58
      %p61 = scmp.ne.s32.totalorder %s44, %s60
      %p62 = scmp.eq.s32.totalorder %s36, 0
      %p63 = por %p61, %p62
      %s65 = sadd.s32 %s64, 1
      %p68 = scmp.eq.s32.totalorder %s30, 4
      %p69 = scmp.ne.s32.totalorder %s64, %s66
      %p70 = scmp.eq.s32.totalorder %s30, 0
      %p71 = por %p69, %p70
      %p72 = scmp.ne.s32.totalorder %s64, %s66
      %p73 = scmp.eq.s32.totalorder %s35, 4
      %p74 = por %p72, %p73
      %p75 = scmp.ne.s32.totalorder %s66, %s67
      %p76 = scmp.eq.s32.totalorder %s35, 0
      %p77 = por %p75, %p76
      %p78 = scmp.ne.s32.totalorder %s66, %s67
      %p79 = scmp.eq.s32.totalorder %s36, 4
      %p80 = por %p78, %p79
      %p82 = scmp.ne.s32.totalorder %s67, %s81
      %p83 = scmp.eq.s32.totalorder %s36, 0
      %p84 = por %p82, %p83
      %s86 = sadd.s32 %s85, 1
      %p89 = scmp.eq.s32.totalorder %s30, 4
      %p90 = scmp.ne.s32.totalorder %s85, %s87
      %p91 = scmp.eq.s32.totalorder %s30, 0
      %p92 = por %p90, %p91
      %p93 = scmp.ne.s32.totalorder %s85, %s87
      %p94 = scmp.eq.s32.totalorder %s35, 4
      %p95 = por %p93, %p94
      %p96 = scmp.ne.s32.totalorder %s87, %s88
      %p97 = scmp.eq.s32.totalorder %s35, 0
      %p98 = por %p96, %p97
      %p99 = scmp.ne.s32.totalorder %s87, %s88
      %p100 = scmp.eq.s32.totalorder %s36, 4
      %p101 = por %p99, %p100
      %p103 = scmp.ne.s32.totalorder %s88, %s102
      %p104 = scmp.eq.s32.totalorder %s36, 0
      %p105 = por %p103, %p104
      %s107 = sadd.s32 %s106, 1
      %p110 = scmp.eq.s32.totalorder %s30, 4
      %p111 = scmp.ne.s32.totalorder %s106, %s108
      %p112 = scmp.eq.s32.totalorder %s30, 0
      %p113 = por %p111, %p112
      %p114 = scmp.ne.s32.totalorder %s106, %s108
      %p115 = scmp.eq.s32.totalorder %s35, 4
      %p116 = por %p114, %p115
      %p117 = scmp.ne.s32.totalorder %s108, %s109
      %p118 = scmp.eq.s32.totalorder %s35, 0
      %p119 = por %p117, %p118
      %p120 = scmp.ne.s32.totalorder %s108, %s109
      %p121 = scmp.eq.s32.totalorder %s36, 4
      %p122 = por %p120, %p121
      %p124 = scmp.ne.s32.totalorder %s109, %s123
      %p125 = scmp.eq.s32.totalorder %s36, 0
      %p126 = por %p124, %p125
      %s128 = sadd.s32 %s127, 1
      %p131 = scmp.eq.s32.totalorder %s30, 4
      %p132 = scmp.ne.s32.totalorder %s127, %s129
      %p133 = scmp.eq.s32.totalorder %s30, 0
      %p134 = por %p132, %p133
      %p135 = scmp.ne.s32.totalorder %s127, %s129
      %p136 = scmp.eq.s32.totalorder %s35, 4
      %p137 = por %p135, %p136
      %p138 = scmp.ne.s32.totalorder %s129, %s130
      %p139 = scmp.eq.s32.totalorder %s35, 0
      %p140 = por %p138, %p139
      %p141 = scmp.ne.s32.totalorder %s129, %s130
      %p142 = scmp.eq.s32.totalorder %s36, 4
      %p143 = por %p141, %p142
      %p145 = scmp.ne.s32.totalorder %s130, %s144
      %p146 = scmp.eq.s32.totalorder %s36, 0
      %p147 = por %p145, %p146
      %s149 = sadd.s32 %s148, 1
      %p152 = scmp.eq.s32.totalorder %s30, 4
      %p153 = scmp.ne.s32.totalorder %s148, %s150
      %p154 = scmp.eq.s32.totalorder %s30, 0
      %p155 = por %p153, %p154
      %p156 = scmp.ne.s32.totalorder %s148, %s150
      %p157 = scmp.eq.s32.totalorder %s35, 4
      %p158 = por %p156, %p157
      %p159 = scmp.ne.s32.totalorder %s150, %s151
      %p160 = scmp.eq.s32.totalorder %s35, 0
      %p161 = por %p159, %p160
      %p162 = scmp.ne.s32.totalorder %s150, %s151
      %p163 = scmp.eq.s32.totalorder %s36, 4
      %p164 = por %p162, %p163
      %p166 = scmp.ne.s32.totalorder %s151, %s165
      %p167 = scmp.eq.s32.totalorder %s36, 0
      %p168 = por %p166, %p167
      %s170 = sadd.s32 %s169, 1
      %p173 = scmp.eq.s32.totalorder %s30, 4
      %p174 = scmp.ne.s32.totalorder %s169, %s171
      %p175 = scmp.eq.s32.totalorder %s30, 0
      %p176 = por %p174, %p175
      %p177 = scmp.ne.s32.totalorder %s169, %s171
      %p178 = scmp.eq.s32.totalorder %s35, 4
      %p179 = por %p177, %p178
      %p180 = scmp.ne.s32.totalorder %s171, %s172
      %p181 = scmp.eq.s32.totalorder %s35, 0
      %p182 = por %p180, %p181
      %p183 = scmp.ne.s32.totalorder %s171, %s172
      %p184 = scmp.eq.s32.totalorder %s36, 4
      %p185 = por %p183, %p184
      %p187 = scmp.ne.s32.totalorder %s172, %s186
      %p188 = scmp.eq.s32.totalorder %s36, 0
      %p189 = por %p187, %p188
      %s191 = sadd.s32 %s190, 1
      %p194 = scmp.eq.s32.totalorder %s30, 4
      %p195 = scmp.ne.s32.totalorder %s190, %s192
      %p196 = scmp.eq.s32.totalorder %s30, 0
      %p197 = por %p195, %p196
      %p198 = scmp.ne.s32.totalorder %s190, %s192
      %p199 = scmp.eq.s32.totalorder %s35, 4
      %p200 = por %p198, %p199
      %p201 = scmp.ne.s32.totalorder %s192, %s193
      %p202 = scmp.eq.s32.totalorder %s35, 0
      %p203 = por %p201, %p202
      %p204 = scmp.ne.s32.totalorder %s192, %s193
      %p205 = scmp.eq.s32.totalorder %s36, 4
      %p206 = por %p204, %p205
      %p208 = scmp.ne.s32.totalorder %s193, %s207
      %p209 = scmp.eq.s32.totalorder %s36, 0
      %p210 = por %p208, %p209
      %s212 = sadd.s32 %s211, 1
      %p215 = scmp.eq.s32.totalorder %s30, 4
      %p216 = scmp.ne.s32.totalorder %s211, %s213
      %p217 = scmp.eq.s32.totalorder %s30, 0
      %p218 = por %p216, %p217
      %p219 = scmp.ne.s32.totalorder %s211, %s213
      %p220 = scmp.eq.s32.totalorder %s35, 4
      %p221 = por %p219, %p220
      %p222 = scmp.ne.s32.totalorder %s213, %s214
      %p223 = scmp.eq.s32.totalorder %s35, 0
      %p224 = por %p222, %p223
      %p225 = scmp.ne.s32.totalorder %s213, %s214
      %p226 = scmp.eq.s32.totalorder %s36, 4
      %p227 = por %p225, %p226
      %p229 = scmp.ne.s32.totalorder %s214, %s228
      %p230 = scmp.eq.s32.totalorder %s36, 0
      %p231 = por %p229, %p230
      %s233 = sadd.s32 %s232, 1
      %p236 = scmp.eq.s32.totalorder %s30, 4
      %p237 = scmp.ne.s32.totalorder %s232, %s234
      %p238 = scmp.eq.s32.totalorder %s30, 0
      %p239 = por %p237, %p238
      %p240 = scmp.ne.s32.totalorder %s232, %s234
      %p241 = scmp.eq.s32.totalorder %s35, 4
      %p242 = por %p240, %p241
      %p243 = scmp.ne.s32.totalorder %s234, %s235
      %p244 = scmp.eq.s32.totalorder %s35, 0
      %p245 = por %p243, %p244
      %p246 = scmp.ne.s32.totalorder %s234, %s235
      %p247 = scmp.eq.s32.totalorder %s36, 4
      %p248 = por %p246, %p247
      %p250 = scmp.ne.s32.totalorder %s235, %s249
      %p251 = scmp.eq.s32.totalorder %s36, 0
      %p252 = por %p250, %p251
      %s254 = sadd.s32 %s253, 1
      %p257 = scmp.eq.s32.totalorder %s30, 4
      %p258 = scmp.ne.s32.totalorder %s253, %s255
      %p259 = scmp.eq.s32.totalorder %s30, 0
      %p260 = por %p258, %p259
      %p261 = scmp.ne.s32.totalorder %s253, %s255
      %p262 = scmp.eq.s32.totalorder %s35, 4
      %p263 = por %p261, %p262
      %p264 = scmp.ne.s32.totalorder %s255, %s256
      %p265 = scmp.eq.s32.totalorder %s35, 0
      %p266 = por %p264, %p265
      %p267 = scmp.ne.s32.totalorder %s255, %s256
      %p268 = scmp.eq.s32.totalorder %s36, 4
      %p269 = por %p267, %p268
      %p271 = scmp.ne.s32.totalorder %s256, %s270
      %p272 = scmp.eq.s32.totalorder %s36, 0
      %p273 = por %p271, %p272
      %s275 = sadd.s32 %s274, 1
      %p278 = scmp.eq.s32.totalorder %s30, 4
      %p279 = scmp.ne.s32.totalorder %s274, %s276
      %p280 = scmp.eq.s32.totalorder %s30, 0
      %p281 = por %p279, %p280
      %p282 = scmp.ne.s32.totalorder %s274, %s276
      %p283 = scmp.eq.s32.totalorder %s35, 4
      %p284 = por %p282, %p283
      %p285 = scmp.ne.s32.totalorder %s276, %s277
      %p286 = scmp.eq.s32.totalorder %s35, 0
      %p287 = por %p285, %p286
      %p288 = scmp.ne.s32.totalorder %s276, %s277
      %p289 = scmp.eq.s32.totalorder %s36, 4
      %p290 = por %p288, %p289
      %p292 = scmp.ne.s32.totalorder %s277, %s291
      %p293 = scmp.eq.s32.totalorder %s36, 0
      %p294 = por %p292, %p293
      %s295 = ssub.s32 %s30, %s37
      %p296 = scmp.eq.s32.totalorder %s295, 0
      %s298 = sadd.s32 %s297, 1
      %s299 = scalar_select %p296, %s297, %s298
      %p302 = pneg %p296
      %p303 = scmp.eq.s32.totalorder %s30, 4
      %p304 = por %p302, %p303
      %p305 = scmp.ne.s32.totalorder %s297, %s300
      %p306 = scmp.eq.s32.totalorder %s30, 0
      %p307 = por %p305, %p306
      %p308 = scmp.ne.s32.totalorder %s297, %s300
      %p309 = scmp.eq.s32.totalorder %s35, 4
      %p310 = por %p308, %p309
      %p311 = scmp.ne.s32.totalorder %s300, %s301
      %p312 = scmp.eq.s32.totalorder %s35, 0
      %p313 = por %p311, %p312
      %p314 = scmp.ne.s32.totalorder %s300, %s301
      %p315 = scmp.eq.s32.totalorder %s36, 4
      %p316 = por %p314, %p315
      %p318 = scmp.ne.s32.totalorder %s301, %s317
      %p319 = scmp.eq.s32.totalorder %s36, 0
      %p320 = por %p318, %p319
      %s321 = ssub.s32 %s30, %s37
      %p322 = scmp.eq.s32.totalorder %s321, 0
      %s324 = sadd.s32 %s323, 1
      %s325 = scalar_select %p322, %s323, %s324
      %p328 = pneg %p322
      %p329 = scmp.eq.s32.totalorder %s30, 4
      %p330 = por %p328, %p329
      %p331 = scmp.ne.s32.totalorder %s323, %s326
      %p332 = scmp.eq.s32.totalorder %s30, 0
      %p333 = por %p331, %p332
      %p334 = scmp.ne.s32.totalorder %s323, %s326
      %p335 = scmp.eq.s32.totalorder %s35, 4
      %p336 = por %p334, %p335
      %p337 = scmp.ne.s32.totalorder %s326, %s327
      %p338 = scmp.eq.s32.totalorder %s35, 0
      %p339 = por %p337, %p338
      %p340 = scmp.ne.s32.totalorder %s326, %s327
      %p341 = scmp.eq.s32.totalorder %s36, 4
      %p342 = por %p340, %p341
      %p344 = scmp.ne.s32.totalorder %s327, %s343
      %p345 = scmp.eq.s32.totalorder %s36, 0
      %p346 = por %p344, %p345
      %p347 = scmp.le.s32.totalorder 1, %s30
      %p348 = scmp.lt.s32.totalorder %s30, 6
      %p349 = pnand %p347, %p348
      %p350 = pneg %p349
      // Predicated region
      $region9: #{tpu_custom_call.1} parent=5 // pred_check
        _
      $region10: #{tpu_custom_call.1} parent=5 // pred_check_branch
        %352 = sbr.rel (%p349) target = $region12
      $region11: #{tpu_custom_call.1} parent=5 // pred_region
        %s353 = ssub.s32 %s30, 1
        // Predicated region
        $region13: #{tpu_custom_call.1} parent=11 // pred_check
          %p354 = pneg %p77
        $region14: #{tpu_custom_call.1} parent=11 // pred_check_branch
          %356 = sbr.rel (%p354) target = $region16
        $region15: #{tpu_custom_call.1} parent=11 // pred_region
          _
        $region16: #{tpu_custom_call.1} parent=11 // pred_fallthru
          _
        // Predicated region
        $region17: #{tpu_custom_call.1} parent=11 // pred_check
          %p357 = pneg %p98
        $region18: #{tpu_custom_call.1} parent=11 // pred_check_branch
          %359 = sbr.rel (%p357) target = $region20
        $region19: #{tpu_custom_call.1} parent=11 // pred_region
          %s361 = ssub.s32 32, 32
          %362 = vsyncadd [#allocation8], %s361
          %s364 = sshll.u32 [#allocation7], 4
          %s365 = int_to_ptr.vmem [resolvable:$true] %s364
          %367 = dma.hbm_to_vmem [thread:$0]  %s2, 32, %s365, [#allocation8]
        $region20: #{tpu_custom_call.1} parent=11 // pred_fallthru
          _
        // Predicated region
        $region21: #{tpu_custom_call.1} parent=11 // pred_check
          %p368 = pneg %p119
        $region22: #{tpu_custom_call.1} parent=11 // pred_check_branch
          %370 = sbr.rel (%p368) target = $region24
        $region23: #{tpu_custom_call.1} parent=11 // pred_region
          _
        $region24: #{tpu_custom_call.1} parent=11 // pred_fallthru
          _
        // Predicated region
        $region25: #{tpu_custom_call.1} parent=11 // pred_check
          %p371 = pneg %p140
        $region26: #{tpu_custom_call.1} parent=11 // pred_check_branch
          %373 = sbr.rel (%p371) target = $region28
        $region27: #{tpu_custom_call.1} parent=11 // pred_region
          _
        $region28: #{tpu_custom_call.1} parent=11 // pred_fallthru
          _
        // Predicated region
        $region29: #{tpu_custom_call.1} parent=11 // pred_check
          %p374 = pneg %p161
        $region30: #{tpu_custom_call.1} parent=11 // pred_check_branch
          %376 = sbr.rel (%p374) target = $region32
        $region31: #{tpu_custom_call.1} parent=11 // pred_region
          _
        $region32: #{tpu_custom_call.1} parent=11 // pred_fallthru
          _
        // Predicated region
        $region33: #{tpu_custom_call.1} parent=11 // pred_check
          %p377 = pneg %p182
        $region34: #{tpu_custom_call.1} parent=11 // pred_check_branch
          %379 = sbr.rel (%p377) target = $region36
        $region35: #{tpu_custom_call.1} parent=11 // pred_region
          _
        $region36: #{tpu_custom_call.1} parent=11 // pred_fallthru
          _
        // Predicated region
        $region37: #{tpu_custom_call.1} parent=11 // pred_check
          %p380 = pneg %p203
        $region38: #{tpu_custom_call.1} parent=11 // pred_check_branch
          %382 = sbr.rel (%p380) target = $region40
        $region39: #{tpu_custom_call.1} parent=11 // pred_region
          %s384 = ssub.s32 256, 256
          %385 = vsyncadd [#allocation8], %s384
          %s386 = sshll.u32 [#allocation9], 4
          %s387 = int_to_ptr.vmem [resolvable:$true] %s386
          %392 = dma.hbm_to_vmem [thread:$0]  %s7, 256, %s387, [#allocation8], 128, 128, 8
        $region40: #{tpu_custom_call.1} parent=11 // pred_fallthru
          _
        // Predicated region
        $region41: #{tpu_custom_call.1} parent=11 // pred_check
          %p393 = pneg %p224
        $region42: #{tpu_custom_call.1} parent=11 // pred_check_branch
          %395 = sbr.rel (%p393) target = $region44
        $region43: #{tpu_custom_call.1} parent=11 // pred_region
          _
        $region44: #{tpu_custom_call.1} parent=11 // pred_fallthru
          _
        // Predicated region
        $region45: #{tpu_custom_call.1} parent=11 // pred_check
          %p396 = pneg %p245
        $region46: #{tpu_custom_call.1} parent=11 // pred_check_branch
          %398 = sbr.rel (%p396) target = $region48
        $region47: #{tpu_custom_call.1} parent=11 // pred_region
          _
        $region48: #{tpu_custom_call.1} parent=11 // pred_fallthru
          _
        // Predicated region
        $region49: #{tpu_custom_call.1} parent=11 // pred_check
          %p399 = pneg %p266
        $region50: #{tpu_custom_call.1} parent=11 // pred_check_branch
          %401 = sbr.rel (%p399) target = $region52
        $region51: #{tpu_custom_call.1} parent=11 // pred_region
          _
        $region52: #{tpu_custom_call.1} parent=11 // pred_fallthru
          _
        // Predicated region
        $region53: #{tpu_custom_call.1} parent=11 // pred_check
          %p402 = pneg %p287
        $region54: #{tpu_custom_call.1} parent=11 // pred_check_branch
          %404 = sbr.rel (%p402) target = $region56
        $region55: #{tpu_custom_call.1} parent=11 // pred_region
          _
        $region56: #{tpu_custom_call.1} parent=11 // pred_fallthru
          _
      $region12: #{tpu_custom_call.1} parent=5 // pred_fallthru
        _
      %p405 = scmp.lt.s32.totalorder %s30, 5
      // Predicated region
      $region57: #{tpu_custom_call.1} parent=5 // pred_check
        %p406 = pneg %p405
      $region58: #{tpu_custom_call.1} parent=5 // pred_check_branch
        %408 = sbr.rel (%p406) target = $region60
      $region59: #{tpu_custom_call.1} parent=5 // pred_region
        // Predicated region
        $region61: #{tpu_custom_call.1} parent=59 // pred_check
          %p409 = pneg %p50
        $region62: #{tpu_custom_call.1} parent=59 // pred_check_branch
          %411 = sbr.rel (%p409) target = $region64
        $region63: #{tpu_custom_call.1} parent=59 // pred_region
          %s412 = sand.u32 %s40, 1
          %s413 = scalar_lea.sflag [#allocation5], %s412
          %s414 = sand.u32 %s40, 1
          %s415 = smul.addr %s414, 2
          %s416 = scalar_lea.vmem [#allocation4], %s415
          %s418 = ssub.s32 32, 32
          %419 = vsyncadd %s413, %s418
          %s420 = smul.addr %s30, 32
          %s421 = scalar_lea.hbm %s0, %s420
          %s423 = sshll.u32 %s416, 4
          %s424 = int_to_ptr.vmem [resolvable:$true] %s423
          %426 = dma.hbm_to_vmem [thread:$0]  %s421, 32, %s424, %s413
        $region64: #{tpu_custom_call.1} parent=59 // pred_fallthru
          _
      $region60: #{tpu_custom_call.1} parent=5 // pred_fallthru
        _
      %p427 = scmp.le.s32.totalorder 1, %s30
      %p428 = scmp.lt.s32.totalorder %s30, 6
      %p429 = pnand %p427, %p428
      %p430 = pneg %p429
      // Predicated region
      $region65: #{tpu_custom_call.1} parent=5 // pred_check
        _
      $region66: #{tpu_custom_call.1} parent=5 // pred_check_branch
        %432 = sbr.rel (%p429) target = $region68
      $region67: #{tpu_custom_call.1} parent=5 // pred_region
        %s433 = ssub.s32 %s30, 1
        %s434 = sand.u32 %s43, 1
        %s435 = scalar_lea.sflag [#allocation5], %s434
        %s436 = sand.u32 %s43, 1
        %s437 = smul.addr %s436, 2
        %s438 = scalar_lea.vmem [#allocation4], %s437
        // Predicated region
        $region69: #{tpu_custom_call.1} parent=67 // pred_check
          %p439 = pneg %p56
        $region70: #{tpu_custom_call.1} parent=67 // pred_check_branch
          %441 = sbr.rel (%p439) target = $region72
        $region71: #{tpu_custom_call.1} parent=67 // pred_region
          %442 = dma.done %s435, 32
        $region72: #{tpu_custom_call.1} parent=67 // pred_fallthru
          _
        // Predicated region
        $region73: #{tpu_custom_call.1} parent=67 // pred_check
          %p443 = pneg %p98
        $region74: #{tpu_custom_call.1} parent=67 // pred_check_branch
          %445 = sbr.rel (%p443) target = $region76
        $region75: #{tpu_custom_call.1} parent=67 // pred_region
          %446 = dma.done [#allocation8], 32
        $region76: #{tpu_custom_call.1} parent=67 // pred_fallthru
          _
        // Predicated region
        $region77: #{tpu_custom_call.1} parent=67 // pred_check
          %p447 = pneg %p203
        $region78: #{tpu_custom_call.1} parent=67 // pred_check_branch
          %449 = sbr.rel (%p447) target = $region80
        $region79: #{tpu_custom_call.1} parent=67 // pred_region
          %450 = dma.done [#allocation8], 256
        $region80: #{tpu_custom_call.1} parent=67 // pred_fallthru
          _
        %s451 = sand.u32 %s43, 1
        %s452 = scalar_lea.sflag [#allocation5], %s451
        %s453 = sand.u32 %s43, 1
        %s454 = smul.addr %s453, 2
        %s455 = scalar_lea.vmem [#allocation4], %s454
        %p456 = pneg %p56
        %p457 = pneg %p53
        %p458 = pneg %p77
        %p459 = pneg %p74
        %p460 = pneg %p98
        %p461 = pneg %p95
        %p462 = pneg %p119
        %p463 = pneg %p116
        %p464 = pneg %p140
        %p465 = pneg %p137
        %p466 = pneg %p161
        %p467 = pneg %p158
        %p468 = pneg %p182
        %p469 = pneg %p179
        %p470 = pneg %p203
        %p471 = pneg %p200
        %p472 = pneg %p224
        %p473 = pneg %p221
        %p474 = pneg %p245
        %p475 = pneg %p242
        %p476 = pneg %p266
        %p477 = pneg %p263
        %p478 = pneg %p287
        %p479 = pneg %p284
        %p480 = pneg %p313
        %p481 = pneg %p310
        %s482 = sand.u32 %s300, 1
        %s483 = scalar_lea.sflag [#allocation6], %s482
        %s484 = sand.u32 %s300, 1
        %s485 = smul.addr %s484, 2
        %s486 = scalar_lea.vmem [#allocation10], %s485
        %p487 = pneg %p339
        %p488 = pneg %p336
        %s489 = sand.u32 %s326, 1
        %s490 = scalar_lea.sflag [#allocation12], %s489
        %s491 = sand.u32 %s326, 1
        %s492 = smul.addr %s491, 2
        %s493 = scalar_lea.vmem [#allocation11], %s492
        %p494 = scmp.eq.s32.totalorder %s35, 0
        // Predicated region
        $region81: #{tpu_custom_call.1} parent=67 // pred_check
          %p495 = pneg %p494
        $region82: #{tpu_custom_call.1} parent=67 // pred_check_branch
          %497 = sbr.rel (%p495) target = $region84
        $region83: #{tpu_custom_call.1} parent=67 // pred_region
          %vm498 = vcmask 254976
          %499 = vst.msk [vmem:[#allocation2] sm:$0x3] %vm498, 0.0
          %500 = vst.msk [vmem:[#allocation3] sm:$0x3] %vm498, 0.0
        $region84: #{tpu_custom_call.1} parent=67 // pred_fallthru
          _
        %v501 = vld [vmem:[#allocation2] sm:$0x3]
        %v502 = vld [vmem:[#allocation3] sm:$0x3]
        %v503 = vld [vmem:[%s438] sm:$0x3]
        %v504 = vld [vmem:[%s1] sm:$0xff]
        %v505 = vld [vmem:[%s1 + $0x8] sm:$0xff]
        %v506 = vld [vmem:[#allocation7] sm:$0x3]
        %v507 = vld [vmem:[%s3] sm:$0xff]
        %v508 = vld [vmem:[%s3 + $0x8] sm:$0xff]
        %v509 = vld [vmem:[%s3 + $0x10] sm:$0xff]
        %v510 = vld [vmem:[%s3 + $0x18] sm:$0xff]
        %vm511 = vcmask 261120
        %v513 = vsel %vm511, %v501, 0
        %515 = vmatprep.subr.mxu0 0.0
        %516 = vmatpush1.msra.mxu0 0.0
        %517 = vmatprep.subr.mxu0 0.0
        %518 = vmatpush1.msra.mxu0 0.0
        %519 = vmatprep.subr.mxu0 0.0
        %520 = vmatpush1.msra.mxu0 0.0
        %521 = vmatprep.subr.mxu0 0.0
        %522 = vmatpush1.msra.mxu0 0.0
        %523 = vmatprep.subr.mxu0 0.0
        %524 = vmatpush1.msra.mxu0 0.0
        %525 = vmatprep.subr.mxu0 0.0
        %526 = vmatpush1.msra.mxu0 0.0
        %527 = vmatprep.subr.mxu0 0.0
        %528 = vmatpush1.msra.mxu0 0.0
        %529 = vmatprep.subr.mxu0 0.0
        %530 = vmatpush1.msra.mxu0 0.0
        %531 = vmatprep.subr.mxu0 0.0
        %532 = vmatpush1.msra.mxu0 0.0
        %533 = vmatprep.subr.mxu0 0.0
        %534 = vmatpush1.msra.mxu0 0.0
        %535 = vmatprep.subr.mxu0 0.0
        %536 = vmatpush1.msra.mxu0 0.0
        %537 = vmatprep.subr.mxu0 0.0
        %538 = vmatpush1.msra.mxu0 0.0
        %539 = vmatprep.subr.mxu0 0.0
        %540 = vmatpush1.msra.mxu0 %v510
        %541 = vmatprep.subr.mxu0 0.0
        %542 = vmatpush1.msra.mxu0 %v509
        %543 = vmatprep.subr.mxu0 0.0
        %544 = vmatpush1.msra.mxu0 %v508
        %545 = vmatprep.subr.mxu0 0.0
        %546 = vmatpush1.msra.mxu0 %v507
        %547 = vmatprep.subr.mxu0 0.0
        %548 = vmatpush2.msra.mxu0 0.0
        %549 = vmatprep.subr.mxu0 0.0
        %550 = vmatpush2.msra.mxu0 0.0
        %551 = vmatprep.subr.mxu0 0.0
        %552 = vmatpush2.msra.mxu0 0.0
        %553 = vmatprep.subr.mxu0 0.0
        %554 = vmatpush2.msra.mxu0 0.0
        %555 = vmatprep.subr.mxu0 0.0
        %556 = vmatpush2.msra.mxu0 0.0
        %557 = vmatprep.subr.mxu0 0.0
        %558 = vmatpush2.msra.mxu0 0.0
        %559 = vmatprep.subr.mxu0 0.0
        %560 = vmatpush2.msra.mxu0 0.0
        %561 = vmatprep.subr.mxu0 0.0
        %562 = vmatpush2.msra.mxu0 0.0
        %563 = vmatprep.subr.mxu0 0.0
        %564 = vmatpush2.msra.mxu0 0.0
        %565 = vmatprep.subr.mxu0 0.0
        %566 = vmatpush2.msra.mxu0 0.0
        %567 = vmatprep.subr.mxu0 0.0
        %568 = vmatpush2.msra.mxu0 0.0
        %569 = vmatprep.subr.mxu0 0.0
        %570 = vmatpush2.msra.mxu0 0.0
        %571 = vmatprep.subr.mxu0 0.0
        %572 = vmatpush2.msra.mxu0 0.0
        %573 = vmatprep.subr.mxu0 0.0
        %574 = vmatpush2.msra.mxu0 0.0
        %575 = vmatprep.subr.mxu0 0.0
        %576 = vmatpush2.msra.mxu0 0.0
        %577 = vmatprep.subr.mxu0 0.0
        %578 = vmatpush2.msra.mxu0 0.0
        %579 = vmatprep.mubr.f32.mxu0 0.0
        %580 = vmatmul.mubr.f32.gmra.mxu0 %v513
        %v581 = vpop.f32.mrf.mxu0
        %v582 = vadd.f32 0.0, %v581
        %v583 = vpop.f32.mrf.mxu0
        %584 = vdwg.mxu0
        %v587 = vunpack.c.l.s4 1966171168
        %v588 = vunpack.c.0.s8 %v587
        %v589 = vlaneseq
        %v590 = vshrl.u32 %v589, 7
        %v591 = vsub.s32 %v588, %v590
        %v592 = vrot.slane %v582, %v591
        %v593 = vcombine.high %v592, %v592
        %v595 = vunpack.c.l.s4 1966171168
        %v596 = vunpack.c.0.s8 %v595
        %v597 = vlaneseq
        %v598 = vshrl.u32 %v597, 7
        %v599 = vsub.s32 %v596, %v598
        %v600 = vrot.slane %v592, %v599
        %v602 = vunpack.c.l.s4 1966171168
        %v603 = vunpack.c.0.s8 %v602
        %v604 = vlaneseq
        %v605 = vshrl.u32 %v604, 7
        %v606 = vsub.s32 %v603, %v605
        %v607 = vrot.slane %v593, %v606
        %v608 = vlaneseq
        %v609 = vshrl.u32 %v608, 7
        %v610 = vsub.s32 0, %v609
        %v611 = vrot.slane %v600, %v610
        %v612 = vlaneseq
        %v613 = vshrl.u32 %v612, 7
        %v614 = vsub.s32 0, %v613
        %v615 = vrot.slane %v607, %v614
        %v618 = vmul.f32 %v611, %v504
        %v619 = vmul.f32 %v615, %v505
        %v620 = vsel %vm511, %v618, 0.0
        %621 = vadd.xlane.f32.xlu0 %v620
        %v622 = vpop.xlane.xlu0 %621
        %v623 = vsel %vm511, %v619, 0.0
        %624 = vadd.xlane.f32.xlu0 %v623
        %v625 = vpop.xlane.xlu0 %624
        %v627 = vlaneseq
        %v628 = vshrl.u32 %v627, 7
        %v629 = vsub.s32 0, %v628
        %v630 = vrot.slane %v506, %v629
        %632 = vbcast.lane.b32.xlu0 %v630, 256
        %v633 = vpop.permute.xlu0 %632
        %v634 = vlaneseq
        %v635 = vshrl.u32 %v634, 7
        %v636 = vsub.s32 1, %v635
        %v637 = vrot.slane %v506, %v636
        %639 = vbcast.lane.b32.xlu0 %v637, 256
        %v640 = vpop.permute.xlu0 %639
        %v643 = vadd.f32 %v622, %v633
        %v644 = vadd.f32 %v625, %v640
        %647 = vset.pattern.permute.xlu0 0
        %648 = vperm.xlu0 %647, %v643
        %v649 = vpop.permute.xlu0 %648
        %650 = vset.pattern.permute.xlu0 0
        %651 = vperm.xlu0 %650, %v644
        %v652 = vpop.permute.xlu0 %651
        %v653 = vlaneseq
        %v654 = vand.u32 %v653, 127
        %v655 = vlaneseq
        %v656 = vshrl.u32 %v655, 7
        %v657 = vsub.s32 %v654, %v656
        %v658 = vrot.slane %v649, %v657
        %v659 = vlaneseq
        %v660 = vshrl.u32 %v659, 7
        %v661 = vsub.s32 %v654, %v660
        %v662 = vrot.slane %v652, %v661
        %vm663 = vcmask 1041409
        %v664 = vsel %vm663, %v662, %v658
        %vm666 = vcmask 58368
        %v667 = vsel %vm666, %v664, -inf
        %668 = vmax.xlane.f32.xlu0 %v667
        %v669 = vpop.xlane.xlu0 %668
        %v671 = vlaneseq
        %v672 = vshrl.u32 %v671, 7
        %v673 = vsub.s32 0, %v672
        %v674 = vrot.slane %v669, %v673
        %v675 = vlaneseq
        %v676 = vshrl.u32 %v675, 7
        %v677 = vsub.s32 1, %v676
        %v678 = vrot.slane %v669, %v677
        %v681 = vsub.f32 %v643, %v674
        %v682 = vsub.f32 %v644, %v678
        %v683 = vmul.f32 %v681, 1.442695
        %v684 = vpow.pop %v683
        %v685 = vmul.f32 %v682, 1.442695
        %v686 = vpow.pop %v685
        %689 = vset.pattern.permute.xlu0 0
        %690 = vperm.xlu0 %689, %v684
        %v691 = vpop.permute.xlu0 %690
        %692 = vset.pattern.permute.xlu0 0
        %693 = vperm.xlu0 %692, %v686
        %v694 = vpop.permute.xlu0 %693
        %v695 = vlaneseq
        %v696 = vshrl.u32 %v695, 7
        %v697 = vsub.s32 %v654, %v696
        %v698 = vrot.slane %v691, %v697
        %v699 = vlaneseq
        %v700 = vshrl.u32 %v699, 7
        %v701 = vsub.s32 %v654, %v700
        %v702 = vrot.slane %v694, %v701
        %v703 = vsel %vm663, %v702, %v698
        %v705 = vsel %vm666, %v703, 0.0
        %706 = vadd.xlane.f32.xlu0 %v705
        %v707 = vpop.xlane.xlu0 %706
        %v709 = vlaneseq
        %v710 = vshrl.u32 %v709, 7
        %v711 = vsub.s32 0, %v710
        %v712 = vrot.slane %v707, %v711
        %v713 = vlaneseq
        %v714 = vshrl.u32 %v713, 7
        %v715 = vsub.s32 1, %v714
        %v716 = vrot.slane %v707, %v715
        %v719 = vrcp.pop %v712
        %v720 = vmul.f32 %v684, %v719
        %v721 = vrcp.pop %v716
        %v722 = vmul.f32 %v686, %v721
        %724 = vset.pattern.permute.xlu0 0
        %725 = vperm.xlu0 %724, %v720
        %v726 = vpop.permute.xlu0 %725
        %729 = vset.pattern.permute.xlu0 0
        %730 = vperm.xlu0 %729, %v722
        %v731 = vpop.permute.xlu0 %730
        %v733 = vmul.f32 %v726, %v504
        %v734 = vmul.f32 %v731, %v505
        %v735 = vsel %vm511, %v733, 0.0
        %v736 = vrot.slane %v735, 4
        %v737 = vadd.f32 %v735, %v736
        %v738 = vrot.slane %v737, 2
        %v739 = vadd.f32 %v737, %v738
        %v740 = vrot.slane %v739, 1
        %v741 = vadd.f32 %v739, %v740
        %v742 = vsel %vm511, %v734, 0.0
        %v743 = vrot.slane %v742, 4
        %v744 = vadd.f32 %v742, %v743
        %v745 = vrot.slane %v744, 2
        %v746 = vadd.f32 %v744, %v745
        %v747 = vrot.slane %v746, 1
        %v748 = vadd.f32 %v746, %v747
        %v749 = vld [vmem:[%s4] sm:$0xff]
        %v750 = vld [vmem:[%s4 + $0x8] sm:$0xff]
        %v751 = vld [vmem:[%s4 + $0x10] sm:$0xff]
        %v752 = vld [vmem:[%s4 + $0x18] sm:$0xff]
        %v753 = vld [vmem:[%s5] sm:$0x1]
        %v755 = vlaneseq
        %v756 = vshrl.u32 %v755, 7
        %v757 = vsub.s32 0, %v756
        %v758 = vrot.slane %v753, %v757
        %v762 = vsel %vm663, %v748, %v741
        %v763 = vsel %vm511, %v762, 0
        %765 = vmatprep.subr.mxu0 0.0
        %766 = vmatpush1.msra.mxu0 0.0
        %767 = vmatprep.subr.mxu0 0.0
        %768 = vmatpush1.msra.mxu0 0.0
        %769 = vmatprep.subr.mxu0 0.0
        %770 = vmatpush1.msra.mxu0 0.0
        %771 = vmatprep.subr.mxu0 0.0
        %772 = vmatpush1.msra.mxu0 0.0
        %773 = vmatprep.subr.mxu0 0.0
        %774 = vmatpush1.msra.mxu0 0.0
        %775 = vmatprep.subr.mxu0 0.0
        %776 = vmatpush1.msra.mxu0 0.0
        %777 = vmatprep.subr.mxu0 0.0
        %778 = vmatpush1.msra.mxu0 0.0
        %779 = vmatprep.subr.mxu0 0.0
        %780 = vmatpush1.msra.mxu0 0.0
        %781 = vmatprep.subr.mxu0 0.0
        %782 = vmatpush1.msra.mxu0 0.0
        %783 = vmatprep.subr.mxu0 0.0
        %784 = vmatpush1.msra.mxu0 0.0
        %785 = vmatprep.subr.mxu0 0.0
        %786 = vmatpush1.msra.mxu0 0.0
        %787 = vmatprep.subr.mxu0 0.0
        %788 = vmatpush1.msra.mxu0 0.0
        %789 = vmatprep.subr.mxu0 0.0
        %790 = vmatpush1.msra.mxu0 %v752
        %791 = vmatprep.subr.mxu0 0.0
        %792 = vmatpush1.msra.mxu0 %v751
        %793 = vmatprep.subr.mxu0 0.0
        %794 = vmatpush1.msra.mxu0 %v750
        %795 = vmatprep.subr.mxu0 0.0
        %796 = vmatpush1.msra.mxu0 %v749
        %797 = vmatprep.subr.mxu0 0.0
        %798 = vmatpush2.msra.mxu0 0.0
        %799 = vmatprep.subr.mxu0 0.0
        %800 = vmatpush2.msra.mxu0 0.0
        %801 = vmatprep.subr.mxu0 0.0
        %802 = vmatpush2.msra.mxu0 0.0
        %803 = vmatprep.subr.mxu0 0.0
        %804 = vmatpush2.msra.mxu0 0.0
        %805 = vmatprep.subr.mxu0 0.0
        %806 = vmatpush2.msra.mxu0 0.0
        %807 = vmatprep.subr.mxu0 0.0
        %808 = vmatpush2.msra.mxu0 0.0
        %809 = vmatprep.subr.mxu0 0.0
        %810 = vmatpush2.msra.mxu0 0.0
        %811 = vmatprep.subr.mxu0 0.0
        %812 = vmatpush2.msra.mxu0 0.0
        %813 = vmatprep.subr.mxu0 0.0
        %814 = vmatpush2.msra.mxu0 0.0
        %815 = vmatprep.subr.mxu0 0.0
        %816 = vmatpush2.msra.mxu0 0.0
        %817 = vmatprep.subr.mxu0 0.0
        %818 = vmatpush2.msra.mxu0 0.0
        %819 = vmatprep.subr.mxu0 0.0
        %820 = vmatpush2.msra.mxu0 0.0
        %821 = vmatprep.subr.mxu0 0.0
        %822 = vmatpush2.msra.mxu0 0.0
        %823 = vmatprep.subr.mxu0 0.0
        %824 = vmatpush2.msra.mxu0 0.0
        %825 = vmatprep.subr.mxu0 0.0
        %826 = vmatpush2.msra.mxu0 0.0
        %827 = vmatprep.subr.mxu0 0.0
        %828 = vmatpush2.msra.mxu0 0.0
        %829 = vmatprep.mubr.f32.mxu0 0.0
        %830 = vmatmul.mubr.f32.gmra.mxu0 %v763
        %v831 = vpop.f32.mrf.mxu0
        %v832 = vadd.f32 %v758, %v831
        %v833 = vpop.f32.mrf.mxu0
        %834 = vdwg.mxu0
        %v835 = vld [vmem:[%s6] sm:$0xff]
        %v836 = vld [vmem:[#allocation9] sm:$0xff]
        %v837 = vld [vmem:[#allocation9 + $0x8] sm:$0xff]
        %vm838 = vcmask 130048
        %v840 = vsel %vm838, %v832, 0
        %842 = vmatprep.subr.mxu0 0.0
        %843 = vmatpush1.msra.mxu0 0.0
        %844 = vmatprep.subr.mxu0 0.0
        %845 = vmatpush1.msra.mxu0 0.0
        %846 = vmatprep.subr.mxu0 0.0
        %847 = vmatpush1.msra.mxu0 0.0
        %848 = vmatprep.subr.mxu0 0.0
        %849 = vmatpush1.msra.mxu0 0.0
        %850 = vmatprep.subr.mxu0 0.0
        %851 = vmatpush1.msra.mxu0 0.0
        %852 = vmatprep.subr.mxu0 0.0
        %853 = vmatpush1.msra.mxu0 0.0
        %854 = vmatprep.subr.mxu0 0.0
        %855 = vmatpush1.msra.mxu0 0.0
        %856 = vmatprep.subr.mxu0 0.0
        %857 = vmatpush1.msra.mxu0 0.0
        %858 = vmatprep.subr.mxu0 0.0
        %859 = vmatpush1.msra.mxu0 0.0
        %860 = vmatprep.subr.mxu0 0.0
        %861 = vmatpush1.msra.mxu0 0.0
        %862 = vmatprep.subr.mxu0 0.0
        %863 = vmatpush1.msra.mxu0 0.0
        %864 = vmatprep.subr.mxu0 0.0
        %865 = vmatpush1.msra.mxu0 0.0
        %866 = vmatprep.subr.mxu0 0.0
        %867 = vmatpush1.msra.mxu0 0.0
        %868 = vmatprep.subr.mxu0 0.0
        %869 = vmatpush1.msra.mxu0 0.0
        %870 = vmatprep.subr.mxu0 0.0
        %871 = vmatpush1.msra.mxu0 %v837
        %872 = vmatprep.subr.mxu0 0.0
        %873 = vmatpush1.msra.mxu0 %v836
        %874 = vmatprep.subr.mxu0 0.0
        %875 = vmatpush2.msra.mxu0 0.0
        %876 = vmatprep.subr.mxu0 0.0
        %877 = vmatpush2.msra.mxu0 0.0
        %878 = vmatprep.subr.mxu0 0.0
        %879 = vmatpush2.msra.mxu0 0.0
        %880 = vmatprep.subr.mxu0 0.0
        %881 = vmatpush2.msra.mxu0 0.0
        %882 = vmatprep.subr.mxu0 0.0
        %883 = vmatpush2.msra.mxu0 0.0
        %884 = vmatprep.subr.mxu0 0.0
        %885 = vmatpush2.msra.mxu0 0.0
        %886 = vmatprep.subr.mxu0 0.0
        %887 = vmatpush2.msra.mxu0 0.0
        %888 = vmatprep.subr.mxu0 0.0
        %889 = vmatpush2.msra.mxu0 0.0
        %890 = vmatprep.subr.mxu0 0.0
        %891 = vmatpush2.msra.mxu0 0.0
        %892 = vmatprep.subr.mxu0 0.0
        %893 = vmatpush2.msra.mxu0 0.0
        %894 = vmatprep.subr.mxu0 0.0
        %895 = vmatpush2.msra.mxu0 0.0
        %896 = vmatprep.subr.mxu0 0.0
        %897 = vmatpush2.msra.mxu0 0.0
        %898 = vmatprep.subr.mxu0 0.0
        %899 = vmatpush2.msra.mxu0 0.0
        %900 = vmatprep.subr.mxu0 0.0
        %901 = vmatpush2.msra.mxu0 0.0
        %902 = vmatprep.subr.mxu0 0.0
        %903 = vmatpush2.msra.mxu0 0.0
        %904 = vmatprep.subr.mxu0 0.0
        %905 = vmatpush2.msra.mxu0 0.0
        %906 = vmatprep.mubr.f32.mxu0 0.0
        %907 = vmatmul.mubr.f32.gmra.mxu0 %v840
        %v908 = vpop.f32.mrf.mxu0
        %v909 = vadd.f32 0.0, %v908
        %v910 = vpop.f32.mrf.mxu0
        %911 = vdwg.mxu0
        %vm912 = vcmask 64512
        %v914 = vsel %vm912, %v503, 0
        %916 = vmatprep.subr.mxu0 0.0
        %917 = vmatpush1.msra.mxu0 0.0
        %918 = vmatprep.subr.mxu0 0.0
        %919 = vmatpush1.msra.mxu0 0.0
        %920 = vmatprep.subr.mxu0 0.0
        %921 = vmatpush1.msra.mxu0 0.0
        %922 = vmatprep.subr.mxu0 0.0
        %923 = vmatpush1.msra.mxu0 0.0
        %924 = vmatprep.subr.mxu0 0.0
        %925 = vmatpush1.msra.mxu0 0.0
        %926 = vmatprep.subr.mxu0 0.0
        %927 = vmatpush1.msra.mxu0 0.0
        %928 = vmatprep.subr.mxu0 0.0
        %929 = vmatpush1.msra.mxu0 0.0
        %930 = vmatprep.subr.mxu0 0.0
        %931 = vmatpush1.msra.mxu0 0.0
        %932 = vmatprep.subr.mxu0 0.0
        %933 = vmatpush1.msra.mxu0 0.0
        %934 = vmatprep.subr.mxu0 0.0
        %935 = vmatpush1.msra.mxu0 0.0
        %936 = vmatprep.subr.mxu0 0.0
        %937 = vmatpush1.msra.mxu0 0.0
        %938 = vmatprep.subr.mxu0 0.0
        %939 = vmatpush1.msra.mxu0 0.0
        %940 = vmatprep.subr.mxu0 0.0
        %941 = vmatpush1.msra.mxu0 0.0
        %942 = vmatprep.subr.mxu0 0.0
        %943 = vmatpush1.msra.mxu0 0.0
        %944 = vmatprep.subr.mxu0 0.0
        %945 = vmatpush1.msra.mxu0 0.0
        %946 = vmatprep.subr.mxu0 0.0
        %947 = vmatpush1.msra.mxu0 %v835
        %948 = vmatprep.subr.mxu0 0.0
        %949 = vmatpush2.msra.mxu0 0.0
        %950 = vmatprep.subr.mxu0 0.0
        %951 = vmatpush2.msra.mxu0 0.0
        %952 = vmatprep.subr.mxu0 0.0
        %953 = vmatpush2.msra.mxu0 0.0
        %954 = vmatprep.subr.mxu0 0.0
        %955 = vmatpush2.msra.mxu0 0.0
        %956 = vmatprep.subr.mxu0 0.0
        %957 = vmatpush2.msra.mxu0 0.0
        %958 = vmatprep.subr.mxu0 0.0
        %959 = vmatpush2.msra.mxu0 0.0
        %960 = vmatprep.subr.mxu0 0.0
        %961 = vmatpush2.msra.mxu0 0.0
        %962 = vmatprep.subr.mxu0 0.0
        %963 = vmatpush2.msra.mxu0 0.0
        %964 = vmatprep.subr.mxu0 0.0
        %965 = vmatpush2.msra.mxu0 0.0
        %966 = vmatprep.subr.mxu0 0.0
        %967 = vmatpush2.msra.mxu0 0.0
        %968 = vmatprep.subr.mxu0 0.0
        %969 = vmatpush2.msra.mxu0 0.0
        %970 = vmatprep.subr.mxu0 0.0
        %971 = vmatpush2.msra.mxu0 0.0
        %972 = vmatprep.subr.mxu0 0.0
        %973 = vmatpush2.msra.mxu0 0.0
        %974 = vmatprep.subr.mxu0 0.0
        %975 = vmatpush2.msra.mxu0 0.0
        %976 = vmatprep.subr.mxu0 0.0
        %977 = vmatpush2.msra.mxu0 0.0
        %978 = vmatprep.subr.mxu0 0.0
        %979 = vmatpush2.msra.mxu0 0.0
        %980 = vmatprep.mubr.f32.mxu0 0.0
        %981 = vmatmul.mubr.f32.gmra.mxu0 %v914
        %v982 = vpop.f32.mrf.mxu0
        %v983 = vadd.f32 %v909, %v982
        %v984 = vpop.f32.mrf.mxu0
        %985 = vdwg.mxu0
        %v986 = vld [vmem:[%s8] sm:$0xff]
        %v987 = vld [vmem:[%s8 + $0x8] sm:$0xff]
        %v988 = vld [vmem:[%s8 + $0x10] sm:$0xff]
        %v989 = vld [vmem:[%s8 + $0x18] sm:$0xff]
        %990 = vmatprep.subr.mxu0 0.0
        %991 = vmatpush1.msra.mxu0 0.0
        %992 = vmatprep.subr.mxu0 0.0
        %993 = vmatpush1.msra.mxu0 0.0
        %994 = vmatprep.subr.mxu0 0.0
        %995 = vmatpush1.msra.mxu0 0.0
        %996 = vmatprep.subr.mxu0 0.0
        %997 = vmatpush1.msra.mxu0 0.0
        %998 = vmatprep.subr.mxu0 0.0
        %999 = vmatpush1.msra.mxu0 0.0
        %1000 = vmatprep.subr.mxu0 0.0
        %1001 = vmatpush1.msra.mxu0 0.0
        %1002 = vmatprep.subr.mxu0 0.0
        %1003 = vmatpush1.msra.mxu0 0.0
        %1004 = vmatprep.subr.mxu0 0.0
        %1005 = vmatpush1.msra.mxu0 0.0
        %1006 = vmatprep.subr.mxu0 0.0
        %1007 = vmatpush1.msra.mxu0 0.0
        %1008 = vmatprep.subr.mxu0 0.0
        %1009 = vmatpush1.msra.mxu0 0.0
        %1010 = vmatprep.subr.mxu0 0.0
        %1011 = vmatpush1.msra.mxu0 0.0
        %1012 = vmatprep.subr.mxu0 0.0
        %1013 = vmatpush1.msra.mxu0 0.0
        %1014 = vmatprep.subr.mxu0 0.0
        %1015 = vmatpush1.msra.mxu0 %v989
        %1016 = vmatprep.subr.mxu0 0.0
        %1017 = vmatpush1.msra.mxu0 %v988
        %1018 = vmatprep.subr.mxu0 0.0
        %1019 = vmatpush1.msra.mxu0 %v987
        %1020 = vmatprep.subr.mxu0 0.0
        %1021 = vmatpush1.msra.mxu0 %v986
        %1022 = vmatprep.subr.mxu0 0.0
        %1023 = vmatpush2.msra.mxu0 0.0
        %1024 = vmatprep.subr.mxu0 0.0
        %1025 = vmatpush2.msra.mxu0 0.0
        %1026 = vmatprep.subr.mxu0 0.0
        %1027 = vmatpush2.msra.mxu0 0.0
        %1028 = vmatprep.subr.mxu0 0.0
        %1029 = vmatpush2.msra.mxu0 0.0
        %1030 = vmatprep.subr.mxu0 0.0
        %1031 = vmatpush2.msra.mxu0 0.0
        %1032 = vmatprep.subr.mxu0 0.0
        %1033 = vmatpush2.msra.mxu0 0.0
        %1034 = vmatprep.subr.mxu0 0.0
        %1035 = vmatpush2.msra.mxu0 0.0
        %1036 = vmatprep.subr.mxu0 0.0
        %1037 = vmatpush2.msra.mxu0 0.0
        %1038 = vmatprep.subr.mxu0 0.0
        %1039 = vmatpush2.msra.mxu0 0.0
        %1040 = vmatprep.subr.mxu0 0.0
        %1041 = vmatpush2.msra.mxu0 0.0
        %1042 = vmatprep.subr.mxu0 0.0
        %1043 = vmatpush2.msra.mxu0 0.0
        %1044 = vmatprep.subr.mxu0 0.0
        %1045 = vmatpush2.msra.mxu0 0.0
        %1046 = vmatprep.subr.mxu0 0.0
        %1047 = vmatpush2.msra.mxu0 0.0
        %1048 = vmatprep.subr.mxu0 0.0
        %1049 = vmatpush2.msra.mxu0 0.0
        %1050 = vmatprep.subr.mxu0 0.0
        %1051 = vmatpush2.msra.mxu0 0.0
        %1052 = vmatprep.subr.mxu0 0.0
        %1053 = vmatpush2.msra.mxu0 0.0
        %1054 = vmatprep.mubr.f32.mxu0 0.0
        %1055 = vmatmul.mubr.f32.gmra.mxu0 %v513
        %v1056 = vpop.f32.mrf.mxu0
        %v1057 = vadd.f32 0.0, %v1056
        %v1058 = vpop.f32.mrf.mxu0
        %1059 = vdwg.mxu0
        %v1060 = vadd.f32 %v983, %v1057
        %v1061 = vld [vmem:[%s9] sm:$0x1]
        %v1063 = vlaneseq
        %v1064 = vshrl.u32 %v1063, 7
        %v1065 = vsub.s32 0, %v1064
        %v1066 = vrot.slane %v1061, %v1065
        %v1068 = vadd.f32 %v1060, %v1066
        %v1069 = vsub.f32 0.0, %v1068
        %v1070 = vmul.f32 %v1069, 1.442695
        %v1071 = vpow.pop %v1070
        %v1072 = vadd.f32 %v1071, 1.0
        %v1073 = vrcp.pop %v1072
        %v1074 = vmul.f32 1.0, %v1073
        %v1075 = vtanh.pop %v1068
        %1077 = vrot.lane.b32.xlu0 %v502, 32
        %v1078 = vpop.permute.xlu0 %1077
        %v1080 = vmul.f32 %v1074, %v1078
        %1082 = vrot.lane.b32.xlu0 %v1075, 64
        %v1083 = vpop.permute.xlu0 %1082
        %v1085 = vmul.f32 %v1074, %v1083
        %1087 = vrot.lane.b32.xlu0 %v1085, 32
        %v1088 = vpop.permute.xlu0 %1087
        %v1090 = vadd.f32 %v1080, %v1088
        %v1091 = vtanh.pop %v1090
        %1093 = vrot.lane.b32.xlu0 %v1091, 64
        %v1094 = vpop.permute.xlu0 %1093
        %v1096 = vmul.f32 %v1074, %v1094
        %v1097 = vld [vmem:[%s10] sm:$0xff]
        %v1098 = vld [vmem:[%s10 + $0x8] sm:$0xff]
        %v1099 = vld [vmem:[%s10 + $0x10] sm:$0xff]
        %v1100 = vld [vmem:[%s10 + $0x18] sm:$0xff]
        %v1101 = vld [vmem:[%s11] sm:$0x1]
        %v1103 = vlaneseq
        %v1104 = vshrl.u32 %v1103, 7
        %v1105 = vsub.s32 0, %v1104
        %v1106 = vrot.slane %v1101, %v1105
        %1109 = vrot.lane.b32.xlu0 %v1096, 32
        %v1110 = vpop.permute.xlu0 %1109
        %v1111 = vsel %vm511, %v1110, 0
        %1113 = vmatprep.subr.mxu0 0.0
        %1114 = vmatpush1.msra.mxu0 0.0
        %1115 = vmatprep.subr.mxu0 0.0
        %1116 = vmatpush1.msra.mxu0 0.0
        %1117 = vmatprep.subr.mxu0 0.0
        %1118 = vmatpush1.msra.mxu0 0.0
        %1119 = vmatprep.subr.mxu0 0.0
        %1120 = vmatpush1.msra.mxu0 0.0
        %1121 = vmatprep.subr.mxu0 0.0
        %1122 = vmatpush1.msra.mxu0 0.0
        %1123 = vmatprep.subr.mxu0 0.0
        %1124 = vmatpush1.msra.mxu0 0.0
        %1125 = vmatprep.subr.mxu0 0.0
        %1126 = vmatpush1.msra.mxu0 0.0
        %1127 = vmatprep.subr.mxu0 0.0
        %1128 = vmatpush1.msra.mxu0 0.0
        %1129 = vmatprep.subr.mxu0 0.0
        %1130 = vmatpush1.msra.mxu0 0.0
        %1131 = vmatprep.subr.mxu0 0.0
        %1132 = vmatpush1.msra.mxu0 0.0
        %1133 = vmatprep.subr.mxu0 0.0
        %1134 = vmatpush1.msra.mxu0 0.0
        %1135 = vmatprep.subr.mxu0 0.0
        %1136 = vmatpush1.msra.mxu0 0.0
        %1137 = vmatprep.subr.mxu0 0.0
        %1138 = vmatpush1.msra.mxu0 %v1100
        %1139 = vmatprep.subr.mxu0 0.0
        %1140 = vmatpush1.msra.mxu0 %v1099
        %1141 = vmatprep.subr.mxu0 0.0
        %1142 = vmatpush1.msra.mxu0 %v1098
        %1143 = vmatprep.subr.mxu0 0.0
        %1144 = vmatpush1.msra.mxu0 %v1097
        %1145 = vmatprep.subr.mxu0 0.0
        %1146 = vmatpush2.msra.mxu0 0.0
        %1147 = vmatprep.subr.mxu0 0.0
        %1148 = vmatpush2.msra.mxu0 0.0
        %1149 = vmatprep.subr.mxu0 0.0
        %1150 = vmatpush2.msra.mxu0 0.0
        %1151 = vmatprep.subr.mxu0 0.0
        %1152 = vmatpush2.msra.mxu0 0.0
        %1153 = vmatprep.subr.mxu0 0.0
        %1154 = vmatpush2.msra.mxu0 0.0
        %1155 = vmatprep.subr.mxu0 0.0
        %1156 = vmatpush2.msra.mxu0 0.0
        %1157 = vmatprep.subr.mxu0 0.0
        %1158 = vmatpush2.msra.mxu0 0.0
        %1159 = vmatprep.subr.mxu0 0.0
        %1160 = vmatpush2.msra.mxu0 0.0
        %1161 = vmatprep.subr.mxu0 0.0
        %1162 = vmatpush2.msra.mxu0 0.0
        %1163 = vmatprep.subr.mxu0 0.0
        %1164 = vmatpush2.msra.mxu0 0.0
        %1165 = vmatprep.subr.mxu0 0.0
        %1166 = vmatpush2.msra.mxu0 0.0
        %1167 = vmatprep.subr.mxu0 0.0
        %1168 = vmatpush2.msra.mxu0 0.0
        %1169 = vmatprep.subr.mxu0 0.0
        %1170 = vmatpush2.msra.mxu0 0.0
        %1171 = vmatprep.subr.mxu0 0.0
        %1172 = vmatpush2.msra.mxu0 0.0
        %1173 = vmatprep.subr.mxu0 0.0
        %1174 = vmatpush2.msra.mxu0 0.0
        %1175 = vmatprep.subr.mxu0 0.0
        %1176 = vmatpush2.msra.mxu0 0.0
        %1177 = vmatprep.mubr.f32.mxu0 0.0
        %1178 = vmatmul.mubr.f32.gmra.mxu0 %v1111
        %v1179 = vpop.f32.mrf.mxu0
        %v1180 = vadd.f32 %v1106, %v1179
        %v1181 = vpop.f32.mrf.mxu0
        %1182 = vdwg.mxu0
        %vm1183 = vcmask 123904
        %1184 = vst.msk [vmem:[%s486] sm:$0x3] %vm1183, %v1180
        %v1185 = vlaneseq
        %v1186 = vshrl.u32 %v1185, 7
        %v1187 = vsub.s32 %v654, %v1186
        %v1188 = vrot.slane %v726, %v1187
        %v1189 = vlaneseq
        %v1190 = vshrl.u32 %v1189, 7
        %v1191 = vsub.s32 %v654, %v1190
        %v1192 = vrot.slane %v731, %v1191
        %v1193 = vsel %vm663, %v1192, %v1188
        %1195 = vst.msk [vmem:[%s493] sm:$0x3] %vm666, %v1193
        %vm1197 = vcmask 254976
        %1198 = vst.msk [vmem:[#allocation2] sm:$0x3] %vm1197, %v1110
        %1200 = vrot.lane.b32.xlu0 %v1090, 96
        %v1201 = vpop.permute.xlu0 %1200
        %1203 = vst.msk [vmem:[#allocation3] sm:$0x3] %vm1197, %v1201
        %s1204 = sand.u32 %s300, 1
        %s1205 = scalar_lea.sflag [#allocation6], %s1204
        %s1206 = sand.u32 %s300, 1
        %s1207 = smul.addr %s1206, 2
        %s1208 = scalar_lea.vmem [#allocation10], %s1207
        %s1209 = sand.u32 %s326, 1
        %s1210 = scalar_lea.sflag [#allocation12], %s1209
        %s1211 = sand.u32 %s326, 1
        %s1212 = smul.addr %s1211, 2
        %s1213 = scalar_lea.vmem [#allocation11], %s1212
        // Predicated region
        $region85: #{tpu_custom_call.1} parent=67 // pred_check
          %p1214 = pneg %p310
        $region86: #{tpu_custom_call.1} parent=67 // pred_check_branch
          %1216 = sbr.rel (%p1214) target = $region88
        $region87: #{tpu_custom_call.1} parent=67 // pred_region
          %s1218 = ssub.s32 32, 32
          %1219 = vsyncadd %s1205, %s1218
          %s1220 = smul.addr %s35, 32
          %s1221 = scalar_lea.hbm %s12, %s1220
          %s1223 = sshll.u32 %s1208, 4
          %s1224 = int_to_ptr.vmem [resolvable:$true] %s1223
          %1226 = dma.vmem_to_hbm [thread:$0]  %s1224, 32, %s1221, %s1205
        $region88: #{tpu_custom_call.1} parent=67 // pred_fallthru
          _
        // Predicated region
        $region89: #{tpu_custom_call.1} parent=67 // pred_check
          %p1227 = pneg %p336
        $region90: #{tpu_custom_call.1} parent=67 // pred_check_branch
          %1229 = sbr.rel (%p1227) target = $region92
        $region91: #{tpu_custom_call.1} parent=67 // pred_region
          %s1231 = ssub.s32 32, 32
          %1232 = vsyncadd %s1210, %s1231
          %s1233 = smul.addr %s35, 32
          %s1234 = scalar_lea.hbm %s13, %s1233
          %s1236 = sshll.u32 %s1213, 4
          %s1237 = int_to_ptr.vmem [resolvable:$true] %s1236
          %1239 = dma.vmem_to_hbm [thread:$0]  %s1237, 32, %s1234, %s1210
        $region92: #{tpu_custom_call.1} parent=67 // pred_fallthru
          _
      $region68: #{tpu_custom_call.1} parent=5 // pred_fallthru
        _
      %p1240 = scmp.le.s32.totalorder 2, %s30
      // Predicated region
      $region93: #{tpu_custom_call.1} parent=5 // pred_check
        %p1241 = pneg %p1240
      $region94: #{tpu_custom_call.1} parent=5 // pred_check_branch
        %1243 = sbr.rel (%p1241) target = $region96
      $region95: #{tpu_custom_call.1} parent=5 // pred_region
        %s1244 = ssub.s32 %s30, 2
        // Predicated region
        $region97: #{tpu_custom_call.1} parent=95 // pred_check
          %p1245 = pneg %p316
        $region98: #{tpu_custom_call.1} parent=95 // pred_check_branch
          %1247 = sbr.rel (%p1245) target = $region100
        $region99: #{tpu_custom_call.1} parent=95 // pred_region
          %s1248 = sand.u32 %s301, 1
          %s1249 = scalar_lea.sflag [#allocation6], %s1248
          %s1250 = sand.u32 %s301, 1
          %s1251 = smul.addr %s1250, 2
          %s1252 = scalar_lea.vmem [#allocation10], %s1251
          %1253 = dma.done %s1249, 32
        $region100: #{tpu_custom_call.1} parent=95 // pred_fallthru
          _
        // Predicated region
        $region101: #{tpu_custom_call.1} parent=95 // pred_check
          %p1254 = pneg %p342
        $region102: #{tpu_custom_call.1} parent=95 // pred_check_branch
          %1256 = sbr.rel (%p1254) target = $region104
        $region103: #{tpu_custom_call.1} parent=95 // pred_region
          %s1257 = sand.u32 %s327, 1
          %s1258 = scalar_lea.sflag [#allocation12], %s1257
          %s1259 = sand.u32 %s327, 1
          %s1260 = smul.addr %s1259, 2
          %s1261 = scalar_lea.vmem [#allocation11], %s1260
          %1262 = dma.done %s1258, 32
        $region104: #{tpu_custom_call.1} parent=95 // pred_fallthru
          _
      $region96: #{tpu_custom_call.1} parent=5 // pred_fallthru
        _
    $region6: #{tpu_custom_call.1} parent=1 // loop_footer
      %s34 = sadd.s32 1, %s30
    $region7: #{tpu_custom_call.1} parent=1 // loop_footer_branch
      %29 = sbr.rel target = $region3
    $region8: #{tpu_custom_call.1} parent=1 // loop_exit
      _
    %1263 = vsyncpa [#allocation5], 1
    %s1264 = scalar_lea.sflag [#allocation5], 1
    %1265 = vsyncpa %s1264, 1
    %1266 = vsyncpa [#allocation8], 1
    %1267 = vsyncpa [#allocation6], 1
    %s1268 = scalar_lea.sflag [#allocation6], 1
    %1269 = vsyncpa %s1268, 1
    %1270 = vsyncpa [#allocation12], 1
    %s1271 = scalar_lea.sflag [#allocation12], 1
    %1272 = vsyncpa %s1271, 1

</llo_original>
